<compile_context>
chip_gen: v5e
topology: v5e:2x2
jax: 0.10.0
libtpu: 0.0.40
codegen_flags: <defaults>
</compile_context>

<pallas_src>
import math

import jax
import jax.numpy as jnp
from jax.experimental import pallas as pl
from jax.experimental.pallas import tpu as pltpu

IN_DIM = 600
N_HIDDEN_1 = 400
N_HIDDEN_2 = 200
OUT_DIM = 1

_H1_PAD = 512        # 400 -> next multiple of 128
_H2_PAD = 256        # 200 -> next multiple of 128
_DEFAULT_TB = 256    # batch tile; fits easily in scoped VMEM on v5e/v6e/v7x


def _round_up(n, m):
    return ((n + m - 1) // m) * m


def _mlp_kernel(x_ref, y_ref, w1x_ref, w1y_ref, b1_ref, w2_ref, b2_ref,
                w3_ref, b3_ref, out_ref):
    # Layer 1: K split over x / y (no concat needed), bf16 MXU, f32 accumulate.
    x_bf = x_ref[...].astype(jnp.bfloat16)
    y_bf = y_ref[...].astype(jnp.bfloat16)
    acc1 = jnp.dot(x_bf, w1x_ref[...], preferred_element_type=jnp.float32)
    acc1 = acc1 + jnp.dot(y_bf, w1y_ref[...], preferred_element_type=jnp.float32)
    h1 = jnp.maximum(acc1 + b1_ref[...], 0.0).astype(jnp.bfloat16)       # (TB, 512)

    # Layer 2.
    acc2 = jnp.dot(h1, w2_ref[...], preferred_element_type=jnp.float32)
    h2 = jnp.maximum(acc2 + b2_ref[...], 0.0).astype(jnp.bfloat16)       # (TB, 256)

    # Layer 3 (N=1): (1,256) . (TB,256)^T -> (1,TB); batch ends up on the lane
    # axis, giving an unmasked, lane-dense output store.
    logits = jax.lax.dot_general(
        w3_ref[...], h2,
        dimension_numbers=(((1,), (1,)), ((), ())),
        preferred_element_type=jnp.float32)                              # (1, TB)
    out_ref[...] = (logits + b3_ref[...]).astype(out_ref.dtype)


def base_model_forward(x, y, params, tb=_DEFAULT_TB):
    """x: (B, Dx), y: (B, Dy) with Dx + Dy == IN_DIM. Returns squeezed logits."""
    w1x, w1y, b1, w2, b2, w3, b3 = params
    B, dx = x.shape
    dy = y.shape[1]

    # Batch tile: multiple of 8 sublanes, capped at `tb`; pad the batch to a
    # tile multiple (padded rows are independent and sliced away below).
    tb = min(tb, _round_up(B, 8))
    b_pad = _round_up(B, tb)
    if b_pad != B:
        x = jnp.pad(x, ((0, b_pad - B), (0, 0)))
        y = jnp.pad(y, ((0, b_pad - B), (0, 0)))

    grid = (pl.cdiv(b_pad, tb),)

    out = pl.pallas_call(
        _mlp_kernel,
        out_shape=jax.ShapeDtypeStruct((1, b_pad), jnp.float32),
        grid=grid,
        in_specs=[
            pl.BlockSpec((tb, dx), lambda i: (i, 0)),            # x tile
            pl.BlockSpec((tb, dy), lambda i: (i, 0)),            # y tile
            pl.BlockSpec((dx, _H1_PAD), lambda i: (0, 0)),       # W1x (resident)
            pl.BlockSpec((dy, _H1_PAD), lambda i: (0, 0)),       # W1y (resident)
            pl.BlockSpec((1, _H1_PAD), lambda i: (0, 0)),        # b1
            pl.BlockSpec((_H1_PAD, _H2_PAD), lambda i: (0, 0)),  # W2 (resident)
            pl.BlockSpec((1, _H2_PAD), lambda i: (0, 0)),        # b2
            pl.BlockSpec((1, _H2_PAD), lambda i: (0, 0)),        # W3 row
            pl.BlockSpec((1, 1), lambda i: (0, 0)),              # b3
        ],
        out_specs=pl.BlockSpec((1, tb), lambda i: (0, i)),       # lane-dense logits
        compiler_params=pltpu.CompilerParams(
            dimension_semantics=("parallel",)),
    )(x, y, w1x, w1y, b1, w2, b2, w3, b3)

    return jnp.squeeze(out[0, :B])        # matches torch.squeeze semantics


def init_params(key, dx, dy):
    """nn.Linear-style init; W1 split into (x, y) halves; padded + bf16 weights."""
    assert dx + dy == IN_DIM
    ks = jax.random.split(key, 6)

    def uniform(k, shape, fan_in):
        bound = 1.0 / math.sqrt(fan_in)
        return jax.random.uniform(k, shape, jnp.float32, -bound, bound)

    # Stored transposed vs. PyTorch: (in, out).
    w1 = uniform(ks[0], (IN_DIM, N_HIDDEN_1), IN_DIM)
    b1 = uniform(ks[1], (1, N_HIDDEN_1), IN_DIM)
    w2 = uniform(ks[2], (N_HIDDEN_1, N_HIDDEN_2), N_HIDDEN_1)
    b2 = uniform(ks[3], (1, N_HIDDEN_2), N_HIDDEN_1)
    w3 = uniform(ks[4], (N_HIDDEN_2, OUT_DIM), N_HIDDEN_2)
    b3 = uniform(ks[5], (1, OUT_DIM), N_HIDDEN_2)

    def pad_to(a, rows, cols):
        return jnp.pad(a, ((0, rows - a.shape[0]), (0, cols - a.shape[1])))

    # Split W1 along its input dim (removes the concat); zero-pad output
    # feature dims to lane multiples (exact math); weights bf16, biases f32.
    w1x = pad_to(w1[:dx], dx, _H1_PAD).astype(jnp.bfloat16)
    w1y = pad_to(w1[dx:], dy, _H1_PAD).astype(jnp.bfloat16)
    b1p = pad_to(b1, 1, _H1_PAD)
    w2p = pad_to(w2, _H1_PAD, _H2_PAD).astype(jnp.bfloat16)
    b2p = pad_to(b2, 1, _H2_PAD)
    w3r = pad_to(w3.T, 1, _H2_PAD).astype(jnp.bfloat16)      # (1, 256) row
    b3p = b3                                                  # (1, 1)
    return (w1x, w1y, b1p, w2p, b2p, w3r, b3p)


def reference_forward(x, y, params):
    """Pure-JAX reference using the same bf16 weights / f32 accumulation."""
    w1x, w1y, b1, w2, b2, w3, b3 = params
    xb = x.astype(jnp.bfloat16)
    yb = y.astype(jnp.bfloat16)
    h1 = (jnp.dot(xb, w1x, preferred_element_type=jnp.float32)
          + jnp.dot(yb, w1y, preferred_element_type=jnp.float32) + b1)
    h1 = jnp.maximum(h1, 0.0).astype(jnp.bfloat16)
    h2 = jnp.maximum(jnp.dot(h1, w2, preferred_element_type=jnp.float32) + b2,
                     0.0).astype(jnp.bfloat16)
    logits = jnp.dot(h2, w3.T, preferred_element_type=jnp.float32) + b3
    return jnp.squeeze(logits)


if __name__ == "__main__":
    key = jax.random.PRNGKey(0)
    kp, kx, ky = jax.random.split(key, 3)

    B, Dx, Dy = 8, 300, 300                   # cat((x, y), 1) -> IN_DIM == 600
    params = init_params(kp, Dx, Dy)
    x = jax.random.normal(kx, (B, Dx), jnp.float32)
    y = jax.random.normal(ky, (B, Dy), jnp.float32)

    logits = base_model_forward(x, y, params)
    jax.block_until_ready(logits)

    ref = reference_forward(x, y, params)
    assert logits.shape == (B,)
    assert jnp.allclose(logits, ref, atol=1e-2, rtol=1e-2), (
        float(jnp.max(jnp.abs(logits - ref))))

    print("KERNEL_OK")
</pallas_src>

<mosaic_0001>
module attributes {stable_mosaic.version = 11 : i64} {
  func.func @_mlp_kernel(%arg0: i32, %arg1: memref<8x300xf32, #tpu.memory_space<vmem>>, %arg2: memref<8x300xf32, #tpu.memory_space<vmem>>, %arg3: memref<300x512xbf16, #tpu.memory_space<vmem>>, %arg4: memref<300x512xbf16, #tpu.memory_space<vmem>>, %arg5: memref<1x512xf32, #tpu.memory_space<vmem>>, %arg6: memref<512x256xbf16, #tpu.memory_space<vmem>>, %arg7: memref<1x256xf32, #tpu.memory_space<vmem>>, %arg8: memref<1x256xbf16, #tpu.memory_space<vmem>>, %arg9: memref<1x1xf32, #tpu.memory_space<vmem>>, %arg10: memref<1x8xf32, #tpu.memory_space<vmem>>) attributes {dimension_semantics = [#tpu.dimension_semantics<parallel>], iteration_bounds = array<i64: 1>, scalar_prefetch = 0 : i64, scratch_operands = 0 : i64, tpu.core_type = #tpu.core_type<tc>, window_params = [{transform_indices = @transform_0, window_bounds = array<i64: 8, 300>}, {transform_indices = @transform_1, window_bounds = array<i64: 8, 300>}, {pipeline_mode = #tpu.pipeline_mode<synchronous>, transform_indices = @transform_2, window_bounds = array<i64: 300, 512>}, {pipeline_mode = #tpu.pipeline_mode<synchronous>, transform_indices = @transform_3, window_bounds = array<i64: 300, 512>}, {pipeline_mode = #tpu.pipeline_mode<synchronous>, transform_indices = @transform_4, window_bounds = array<i64: 1, 512>}, {pipeline_mode = #tpu.pipeline_mode<synchronous>, transform_indices = @transform_5, window_bounds = array<i64: 512, 256>}, {pipeline_mode = #tpu.pipeline_mode<synchronous>, transform_indices = @transform_6, window_bounds = array<i64: 1, 256>}, {pipeline_mode = #tpu.pipeline_mode<synchronous>, transform_indices = @transform_7, window_bounds = array<i64: 1, 256>}, {pipeline_mode = #tpu.pipeline_mode<synchronous>, transform_indices = @transform_8, window_bounds = array<i64: 1, 1>}, {transform_indices = @transform_9, window_bounds = array<i64: 1, 8>}]} {
    %c0 = arith.constant 0 : index
    %c0_0 = arith.constant 0 : index
    %0 = vector.load %arg1[%c0, %c0_0] : memref<8x300xf32, #tpu.memory_space<vmem>>, vector<8x300xf32>
    %1 = arith.truncf %0 : vector<8x300xf32> to vector<8x300xbf16>
    %c0_1 = arith.constant 0 : index
    %c0_2 = arith.constant 0 : index
    %2 = vector.load %arg2[%c0_1, %c0_2] : memref<8x300xf32, #tpu.memory_space<vmem>>, vector<8x300xf32>
    %3 = arith.truncf %2 : vector<8x300xf32> to vector<8x300xbf16>
    %c0_3 = arith.constant 0 : index
    %c0_4 = arith.constant 0 : index
    %4 = vector.load %arg3[%c0_3, %c0_4] : memref<300x512xbf16, #tpu.memory_space<vmem>>, vector<300x512xbf16>
    %cst = arith.constant dense<0.000000e+00> : vector<8x512xf32>
    %5 = tpu.matmul %1, %4, %cst {dimension_numbers = #tpu.dot_dimension_numbers<[1], [0], [0], [1], [0, 0, 1, 1], [], []>} : vector<8x300xbf16>, vector<300x512xbf16>, vector<8x512xf32> -> vector<8x512xf32>
    %c0_5 = arith.constant 0 : index
    %c0_6 = arith.constant 0 : index
    %6 = vector.load %arg4[%c0_5, %c0_6] : memref<300x512xbf16, #tpu.memory_space<vmem>>, vector<300x512xbf16>
    %cst_7 = arith.constant dense<0.000000e+00> : vector<8x512xf32>
    %7 = tpu.matmul %3, %6, %cst_7 {dimension_numbers = #tpu.dot_dimension_numbers<[1], [0], [0], [1], [0, 0, 1, 1], [], []>} : vector<8x300xbf16>, vector<300x512xbf16>, vector<8x512xf32> -> vector<8x512xf32>
    %8 = arith.addf %5, %7 : vector<8x512xf32>
    %c0_8 = arith.constant 0 : index
    %c0_9 = arith.constant 0 : index
    %9 = vector.load %arg5[%c0_8, %c0_9] : memref<1x512xf32, #tpu.memory_space<vmem>>, vector<1x512xf32>
    %10 = vector.broadcast %9 : vector<1x512xf32> to vector<8x512xf32>
    %11 = arith.addf %8, %10 : vector<8x512xf32>
    %cst_10 = arith.constant 0.000000e+00 : f32
    %12 = vector.broadcast %cst_10 : f32 to vector<8x512xf32>
    %13 = arith.maximumf %11, %12 : vector<8x512xf32>
    %14 = arith.truncf %13 : vector<8x512xf32> to vector<8x512xbf16>
    %c0_11 = arith.constant 0 : index
    %c0_12 = arith.constant 0 : index
    %15 = vector.load %arg6[%c0_11, %c0_12] : memref<512x256xbf16, #tpu.memory_space<vmem>>, vector<512x256xbf16>
    %cst_13 = arith.constant dense<0.000000e+00> : vector<8x256xf32>
    %16 = tpu.matmul %14, %15, %cst_13 {dimension_numbers = #tpu.dot_dimension_numbers<[1], [0], [0], [1], [0, 0, 1, 1], [], []>} : vector<8x512xbf16>, vector<512x256xbf16>, vector<8x256xf32> -> vector<8x256xf32>
    %c0_14 = arith.constant 0 : index
    %c0_15 = arith.constant 0 : index
    %17 = vector.load %arg7[%c0_14, %c0_15] : memref<1x256xf32, #tpu.memory_space<vmem>>, vector<1x256xf32>
    %18 = vector.broadcast %17 : vector<1x256xf32> to vector<8x256xf32>
    %19 = arith.addf %16, %18 : vector<8x256xf32>
    %cst_16 = arith.constant 0.000000e+00 : f32
    %20 = vector.broadcast %cst_16 : f32 to vector<8x256xf32>
    %21 = arith.maximumf %19, %20 : vector<8x256xf32>
    %22 = arith.truncf %21 : vector<8x256xf32> to vector<8x256xbf16>
    %c0_17 = arith.constant 0 : index
    %c0_18 = arith.constant 0 : index
    %23 = vector.load %arg8[%c0_17, %c0_18] : memref<1x256xbf16, #tpu.memory_space<vmem>>, vector<1x256xbf16>
    %cst_19 = arith.constant dense<0.000000e+00> : vector<1x8xf32>
    %24 = tpu.matmul %23, %22, %cst_19 {dimension_numbers = #tpu.dot_dimension_numbers<[1], [1], [0], [0], [0, 0, 1, 0], [], []>} : vector<1x256xbf16>, vector<8x256xbf16>, vector<1x8xf32> -> vector<1x8xf32>
    %c0_20 = arith.constant 0 : index
    %c0_21 = arith.constant 0 : index
    %25 = vector.load %arg9[%c0_20, %c0_21] : memref<1x1xf32, #tpu.memory_space<vmem>>, vector<1x1xf32>
    %26 = vector.broadcast %25 : vector<1x1xf32> to vector<1x8xf32>
    %27 = arith.addf %24, %26 : vector<1x8xf32>
    %c0_22 = arith.constant 0 : index
    %c0_23 = arith.constant 0 : index
    %28 = vector.load %arg10[%c0_22, %c0_23] : memref<1x8xf32, #tpu.memory_space<vmem>>, vector<1x8xf32>
    tpu.vector_store %arg10[%c0_22, %c0_23], %27 {strides = array<i32>} : memref<1x8xf32, #tpu.memory_space<vmem>>, vector<1x8xf32>,
    return
  }
  func.func @transform_0(%arg0: i32) -> (i32, i32) {
    %c0_i32 = arith.constant 0 : i32
    %c0_i32_0 = arith.constant 0 : i32
    return %arg0, %c0_i32 : i32, i32
  }
  func.func @transform_1(%arg0: i32) -> (i32, i32) {
    %c0_i32 = arith.constant 0 : i32
    %c0_i32_0 = arith.constant 0 : i32
    return %arg0, %c0_i32 : i32, i32
  }
  func.func @transform_2(%arg0: i32) -> (i32, i32) {
    %c0_i32 = arith.constant 0 : i32
    %c0_i32_0 = arith.constant 0 : i32
    %c0_i32_1 = arith.constant 0 : i32
    return %c0_i32, %c0_i32_0 : i32, i32
  }
  func.func @transform_3(%arg0: i32) -> (i32, i32) {
    %c0_i32 = arith.constant 0 : i32
    %c0_i32_0 = arith.constant 0 : i32
    %c0_i32_1 = arith.constant 0 : i32
    return %c0_i32, %c0_i32_0 : i32, i32
  }
  func.func @transform_4(%arg0: i32) -> (i32, i32) {
    %c0_i32 = arith.constant 0 : i32
    %c0_i32_0 = arith.constant 0 : i32
    %c0_i32_1 = arith.constant 0 : i32
    return %c0_i32, %c0_i32_0 : i32, i32
  }
  func.func @transform_5(%arg0: i32) -> (i32, i32) {
    %c0_i32 = arith.constant 0 : i32
    %c0_i32_0 = arith.constant 0 : i32
    %c0_i32_1 = arith.constant 0 : i32
    return %c0_i32, %c0_i32_0 : i32, i32
  }
  func.func @transform_6(%arg0: i32) -> (i32, i32) {
    %c0_i32 = arith.constant 0 : i32
    %c0_i32_0 = arith.constant 0 : i32
    %c0_i32_1 = arith.constant 0 : i32
    return %c0_i32, %c0_i32_0 : i32, i32
  }
  func.func @transform_7(%arg0: i32) -> (i32, i32) {
    %c0_i32 = arith.constant 0 : i32
    %c0_i32_0 = arith.constant 0 : i32
    %c0_i32_1 = arith.constant 0 : i32
    return %c0_i32, %c0_i32_0 : i32, i32
  }
  func.func @transform_8(%arg0: i32) -> (i32, i32) {
    %c0_i32 = arith.constant 0 : i32
    %c0_i32_0 = arith.constant 0 : i32
    %c0_i32_1 = arith.constant 0 : i32
    return %c0_i32, %c0_i32_0 : i32, i32
  }
  func.func @transform_9(%arg0: i32) -> (i32, i32) {
    %c0_i32 = arith.constant 0 : i32
    %c0_i32_0 = arith.constant 0 : i32
    return %c0_i32, %arg0 : i32, i32
  }
}

</mosaic_0001>

<llo_original>
// kernel: tpu_custom_call.1
$region0: #{tpu_custom_call.1}
  #allocation0 [shape = 'u32[]', space=smem, size = 0x4, offset = 0x4, fixed_abs, tag = 'smem constant byte address 0x4 - core index']
  #allocation1 [shape = 'u32[72,128]{1,0:T(1,128)}', space=vmem, size = 0x9000, scoped, tag = 'internal scratch']
  #allocation2 [shape = 'f32[1,1]{1,0:T(1,128)S(1)}', space=vmem, size = 0x200, scoped, tag = 'scoped memory for tpu_custom_call.1']
  %s0 = inlined_call_operand.hbm [shape: f32[8,300], index: 0, kind: input, shape index: {}]
  %s1 = inlined_call_operand.hbm [shape: f32[8,300], index: 1, kind: input, shape index: {}]
  %s2 = inlined_call_operand.hbm [shape: bf16[300,512], index: 2, kind: input, shape index: {}]
  %s3 = inlined_call_operand.hbm [shape: bf16[300,512], index: 3, kind: input, shape index: {}]
  %s4 = inlined_call_operand.vmem [shape: f32[1,512], index: 4, kind: input, shape index: {}]
  %s5 = inlined_call_operand.hbm [shape: bf16[512,256], index: 5, kind: input, shape index: {}]
  %s6 = inlined_call_operand.vmem [shape: f32[1,256], index: 6, kind: input, shape index: {}]
  %s7 = inlined_call_operand.vmem [shape: bf16[1,256], index: 7, kind: input, shape index: {}]
  %s8 = inlined_call_operand.<no memory space> [shape: f32[1,1], index: 8, kind: input, shape index: {}]
  %s9 = inlined_call_operand.hbm [shape: f32[1,8], index: 9, kind: output, shape index: {}]
  %s10 = sld [smem:[#allocation0]]
  $region66: #{tpu_custom_call.1} parent=0
    _
  %s12 = ssub.s32 1, %s10
  %s13 = scalar_select 0, %s12, %s10
  %v14 = vstv %s8
  %15 = vst [vmem:[#allocation2] sm:$0x1] %v14
  $region1: #{tpu_custom_call.1} parent=0
    #allocation3 [shape = 'u8[12288]{0}', space=vmem, size = 0x3000, scoped, tag = 'input window, operand 0, single buffered']
    #allocation4 [shape = 's32[1]{0}', space=sflag, size = 0x4, scoped, tag = 'scoped memory for tpu_custom_call.1']
    #allocation5 [shape = 's32[1]{0}', space=sflag, size = 0x4, scoped, tag = 'scoped memory for tpu_custom_call.1']
    #allocation6 [shape = 'u8[12288]{0}', space=vmem, size = 0x3000, scoped, tag = 'input window, operand 1, single buffered']
    #allocation7 [shape = 's32[1]{0}', space=sflag, size = 0x4, scoped, tag = 'scoped memory for tpu_custom_call.1']
    #allocation8 [shape = 'u8[311296]{0}', space=vmem, size = 0x4c000, scoped, tag = 'input window, operand 2, single buffered']
    #allocation9 [shape = 'u8[311296]{0}', space=vmem, size = 0x4c000, scoped, tag = 'input window, operand 3, single buffered']
    #allocation10 [shape = 's32[1]{0}', space=sflag, size = 0x4, scoped, tag = 'scoped memory for tpu_custom_call.1']
    #allocation11 [shape = 'u8[262144]{0}', space=vmem, size = 0x40000, scoped, tag = 'input window, operand 5, single buffered']
    #allocation12 [shape = 'u8[512]{0}', space=vmem, size = 0x400, scoped, tag = 'output window, operand 0, single buffered']
    %16 = vsyncpa [#allocation4], 0
    %17 = vsyncpa [#allocation7], 0
    %18 = vsyncpa [#allocation10], 0
    %19 = vsyncpa [#allocation5], 0
    // Predicated region
    $region2: #{tpu_custom_call.1} parent=1 // pred_check
      _
    $region3: #{tpu_custom_call.1} parent=1 // pred_check_branch
      %21 = sbr.rel (0) target = $region5
    $region4: #{tpu_custom_call.1} parent=1 // pred_region
      %23 = vsyncadd [#allocation4], 0
      %s25 = sshll.u32 %s0, 4
      %s26 = int_to_ptr.hbm [resolvable:$true] %s25
      %s27 = sshll.u32 [#allocation3], 4
      %s28 = int_to_ptr.vmem [resolvable:$true] %s27
      %30 = dma.hbm_to_vmem [thread:$0]  %s26, 384, %s28, [#allocation4]
    $region5: #{tpu_custom_call.1} parent=1 // pred_fallthru
      _
    // Predicated region
    $region6: #{tpu_custom_call.1} parent=1 // pred_check
      _
    $region7: #{tpu_custom_call.1} parent=1 // pred_check_branch
      %32 = sbr.rel (0) target = $region9
    $region8: #{tpu_custom_call.1} parent=1 // pred_region
      %34 = vsyncadd [#allocation7], 0
      %s36 = sshll.u32 %s1, 4
      %s37 = int_to_ptr.hbm [resolvable:$true] %s36
      %s38 = sshll.u32 [#allocation6], 4
      %s39 = int_to_ptr.vmem [resolvable:$true] %s38
      %41 = dma.hbm_to_vmem [thread:$0]  %s37, 384, %s39, [#allocation7]
    $region9: #{tpu_custom_call.1} parent=1 // pred_fallthru
      _
    // Predicated region
    $region10: #{tpu_custom_call.1} parent=1 // pred_check
      _
    $region11: #{tpu_custom_call.1} parent=1 // pred_check_branch
      %43 = sbr.rel (0) target = $region13
    $region12: #{tpu_custom_call.1} parent=1 // pred_region
      %45 = vsyncadd [#allocation7], 0
      %s46 = sshll.u32 %s2, 4
      %s47 = int_to_ptr.hbm [resolvable:$true] %s46
      %s48 = sshll.u32 [#allocation8], 4
      %s49 = int_to_ptr.vmem [resolvable:$true] %s48
      %54 = dma.hbm_to_vmem [thread:$0]  %s47, 9728, %s49, [#allocation7], 256, 256, 16
    $region13: #{tpu_custom_call.1} parent=1 // pred_fallthru
      _
    // Predicated region
    $region14: #{tpu_custom_call.1} parent=1 // pred_check
      _
    $region15: #{tpu_custom_call.1} parent=1 // pred_check_branch
      %56 = sbr.rel (0) target = $region17
    $region16: #{tpu_custom_call.1} parent=1 // pred_region
      %58 = vsyncadd [#allocation10], 0
      %s59 = sshll.u32 %s3, 4
      %s60 = int_to_ptr.hbm [resolvable:$true] %s59
      %s61 = sshll.u32 [#allocation9], 4
      %s62 = int_to_ptr.vmem [resolvable:$true] %s61
      %67 = dma.hbm_to_vmem [thread:$0]  %s60, 9728, %s62, [#allocation10], 256, 256, 16
    $region17: #{tpu_custom_call.1} parent=1 // pred_fallthru
      _
    // Predicated region
    $region18: #{tpu_custom_call.1} parent=1 // pred_check
      _
    $region19: #{tpu_custom_call.1} parent=1 // pred_check_branch
      %69 = sbr.rel (0) target = $region21
    $region20: #{tpu_custom_call.1} parent=1 // pred_region
      _
    $region21: #{tpu_custom_call.1} parent=1 // pred_fallthru
      _
    // Predicated region
    $region22: #{tpu_custom_call.1} parent=1 // pred_check
      _
    $region23: #{tpu_custom_call.1} parent=1 // pred_check_branch
      %71 = sbr.rel (0) target = $region25
    $region24: #{tpu_custom_call.1} parent=1 // pred_region
      %73 = vsyncadd [#allocation10], 0
      %s74 = sshll.u32 %s5, 4
      %s75 = int_to_ptr.hbm [resolvable:$true] %s74
      %s76 = sshll.u32 [#allocation11], 4
      %s77 = int_to_ptr.vmem [resolvable:$true] %s76
      %82 = dma.hbm_to_vmem [thread:$0]  %s75, 8192, %s77, [#allocation10], 128, 128, 8
    $region25: #{tpu_custom_call.1} parent=1 // pred_fallthru
      _
    // Predicated region
    $region26: #{tpu_custom_call.1} parent=1 // pred_check
      _
    $region27: #{tpu_custom_call.1} parent=1 // pred_check_branch
      %84 = sbr.rel (0) target = $region29
    $region28: #{tpu_custom_call.1} parent=1 // pred_region
      _
    $region29: #{tpu_custom_call.1} parent=1 // pred_fallthru
      _
    // Predicated region
    $region30: #{tpu_custom_call.1} parent=1 // pred_check
      _
    $region31: #{tpu_custom_call.1} parent=1 // pred_check_branch
      %86 = sbr.rel (0) target = $region33
    $region32: #{tpu_custom_call.1} parent=1 // pred_region
      _
    $region33: #{tpu_custom_call.1} parent=1 // pred_fallthru
      _
    // Predicated region
    $region34: #{tpu_custom_call.1} parent=1 // pred_check
      _
    $region35: #{tpu_custom_call.1} parent=1 // pred_check_branch
      %88 = sbr.rel (0) target = $region37
    $region36: #{tpu_custom_call.1} parent=1 // pred_region
      _
    $region37: #{tpu_custom_call.1} parent=1 // pred_fallthru
      _
    // Predicated region
    $region38: #{tpu_custom_call.1} parent=1 // pred_check
      _
    $region39: #{tpu_custom_call.1} parent=1 // pred_check_branch
      %90 = sbr.rel (0) target = $region41
    $region40: #{tpu_custom_call.1} parent=1 // pred_region
      %92 = dma.done [#allocation4], 384
    $region41: #{tpu_custom_call.1} parent=1 // pred_fallthru
      _
    // Predicated region
    $region42: #{tpu_custom_call.1} parent=1 // pred_check
      _
    $region43: #{tpu_custom_call.1} parent=1 // pred_check_branch
      %94 = sbr.rel (0) target = $region45
    $region44: #{tpu_custom_call.1} parent=1 // pred_region
      %96 = dma.done [#allocation7], 384
    $region45: #{tpu_custom_call.1} parent=1 // pred_fallthru
      _
    // Predicated region
    $region46: #{tpu_custom_call.1} parent=1 // pred_check
      _
    $region47: #{tpu_custom_call.1} parent=1 // pred_check_branch
      %98 = sbr.rel (0) target = $region49
    $region48: #{tpu_custom_call.1} parent=1 // pred_region
      %100 = dma.done [#allocation7], 9728
    $region49: #{tpu_custom_call.1} parent=1 // pred_fallthru
      _
    // Predicated region
    $region50: #{tpu_custom_call.1} parent=1 // pred_check
      _
    $region51: #{tpu_custom_call.1} parent=1 // pred_check_branch
      %102 = sbr.rel (0) target = $region53
    $region52: #{tpu_custom_call.1} parent=1 // pred_region
      %104 = dma.done [#allocation10], 9728
    $region53: #{tpu_custom_call.1} parent=1 // pred_fallthru
      _
    // Predicated region
    $region54: #{tpu_custom_call.1} parent=1 // pred_check
      _
    $region55: #{tpu_custom_call.1} parent=1 // pred_check_branch
      %106 = sbr.rel (0) target = $region57
    $region56: #{tpu_custom_call.1} parent=1 // pred_region
      %108 = dma.done [#allocation10], 8192
    $region57: #{tpu_custom_call.1} parent=1 // pred_fallthru
      _
    %v110 = vld [vmem:[#allocation3] sm:$0xff]
    %v111 = vld [vmem:[#allocation3 + $0x8] sm:$0xff]
    %v112 = vld [vmem:[#allocation3 + $0x10] sm:$0xff]
    %v113 = vpack.c.bf16 %v110, %v110
    %v114 = vpack.c.bf16 %v111, %v111
    %v115 = vpack.c.bf16 %v112, %v112
    %v116 = vld [vmem:[#allocation6] sm:$0xff]
    %v117 = vld [vmem:[#allocation6 + $0x8] sm:$0xff]
    %v118 = vld [vmem:[#allocation6 + $0x10] sm:$0xff]
    %v119 = vpack.c.bf16 %v116, %v116
    %v120 = vpack.c.bf16 %v117, %v117
    %v121 = vpack.c.bf16 %v118, %v118
    %v122 = vld [vmem:[#allocation8] sm:$0xff]
    %v123 = vld [vmem:[#allocation8 + $0x8] sm:$0xff]
    %v124 = vld [vmem:[#allocation8 + $0x10] sm:$0xff]
    %v125 = vld [vmem:[#allocation8 + $0x18] sm:$0xff]
    %v126 = vld [vmem:[#allocation8 + $0x20] sm:$0xff]
    %v127 = vld [vmem:[#allocation8 + $0x28] sm:$0xff]
    %v128 = vld [vmem:[#allocation8 + $0x30] sm:$0xff]
    %v129 = vld [vmem:[#allocation8 + $0x38] sm:$0xff]
    %v130 = vld [vmem:[#allocation8 + $0x40] sm:$0xff]
    %v131 = vld [vmem:[#allocation8 + $0x48] sm:$0xff]
    %v132 = vld [vmem:[#allocation8 + $0x50] sm:$0xff]
    %v133 = vld [vmem:[#allocation8 + $0x58] sm:$0xff]
    %v134 = vld [vmem:[#allocation8 + $0x60] sm:$0xff]
    %v135 = vld [vmem:[#allocation8 + $0x68] sm:$0xff]
    %v136 = vld [vmem:[#allocation8 + $0x70] sm:$0xff]
    %v137 = vld [vmem:[#allocation8 + $0x78] sm:$0xff]
    %v138 = vld [vmem:[#allocation8 + $0x80] sm:$0xff]
    %v139 = vld [vmem:[#allocation8 + $0x88] sm:$0xff]
    %v140 = vld [vmem:[#allocation8 + $0x90] sm:$0xff]
    %v141 = vld [vmem:[#allocation8 + $0x98] sm:$0xff]
    %v142 = vld [vmem:[#allocation8 + $0xa0] sm:$0xff]
    %v143 = vld [vmem:[#allocation8 + $0xa8] sm:$0xff]
    %v144 = vld [vmem:[#allocation8 + $0xb0] sm:$0xff]
    %v145 = vld [vmem:[#allocation8 + $0xb8] sm:$0xff]
    %v146 = vld [vmem:[#allocation8 + $0xc0] sm:$0xff]
    %v147 = vld [vmem:[#allocation8 + $0xc8] sm:$0xff]
    %v148 = vld [vmem:[#allocation8 + $0xd0] sm:$0xff]
    %v149 = vld [vmem:[#allocation8 + $0xd8] sm:$0xff]
    %v150 = vld [vmem:[#allocation8 + $0xe0] sm:$0xff]
    %v151 = vld [vmem:[#allocation8 + $0xe8] sm:$0xff]
    %v152 = vld [vmem:[#allocation8 + $0xf0] sm:$0xff]
    %v153 = vld [vmem:[#allocation8 + $0xf8] sm:$0xff]
    %v154 = vld [vmem:[#allocation8 + $0x100] sm:$0xff]
    %v155 = vld [vmem:[#allocation8 + $0x108] sm:$0xff]
    %v156 = vld [vmem:[#allocation8 + $0x110] sm:$0xff]
    %v157 = vld [vmem:[#allocation8 + $0x118] sm:$0xff]
    %v158 = vld [vmem:[#allocation8 + $0x120] sm:$0xff]
    %v159 = vld [vmem:[#allocation8 + $0x128] sm:$0xff]
    %v160 = vld [vmem:[#allocation8 + $0x130] sm:$0xff]
    %v161 = vld [vmem:[#allocation8 + $0x138] sm:$0xff]
    %v162 = vld [vmem:[#allocation8 + $0x140] sm:$0xff]
    %v163 = vld [vmem:[#allocation8 + $0x148] sm:$0xff]
    %v164 = vld [vmem:[#allocation8 + $0x150] sm:$0xff]
    %v165 = vld [vmem:[#allocation8 + $0x158] sm:$0xff]
    %v166 = vld [vmem:[#allocation8 + $0x160] sm:$0xff]
    %v167 = vld [vmem:[#allocation8 + $0x168] sm:$0xff]
    %v168 = vld [vmem:[#allocation8 + $0x170] sm:$0xff]
    %v169 = vld [vmem:[#allocation8 + $0x178] sm:$0xff]
    %v170 = vld [vmem:[#allocation8 + $0x180] sm:$0xff]
    %v171 = vld [vmem:[#allocation8 + $0x188] sm:$0xff]
    %v172 = vld [vmem:[#allocation8 + $0x190] sm:$0xff]
    %v173 = vld [vmem:[#allocation8 + $0x198] sm:$0xff]
    %v174 = vld [vmem:[#allocation8 + $0x1a0] sm:$0xff]
    %v175 = vld [vmem:[#allocation8 + $0x1a8] sm:$0xff]
    %v176 = vld [vmem:[#allocation8 + $0x1b0] sm:$0xff]
    %v177 = vld [vmem:[#allocation8 + $0x1b8] sm:$0xff]
    %v178 = vld [vmem:[#allocation8 + $0x1c0] sm:$0xff]
    %v179 = vld [vmem:[#allocation8 + $0x1c8] sm:$0xff]
    %v180 = vld [vmem:[#allocation8 + $0x1d0] sm:$0xff]
    %v181 = vld [vmem:[#allocation8 + $0x1d8] sm:$0xff]
    %v182 = vld [vmem:[#allocation8 + $0x1e0] sm:$0xff]
    %v183 = vld [vmem:[#allocation8 + $0x1e8] sm:$0xff]
    %v184 = vld [vmem:[#allocation8 + $0x1f0] sm:$0xff]
    %v185 = vld [vmem:[#allocation8 + $0x1f8] sm:$0xff]
    %v186 = vld [vmem:[#allocation8 + $0x200] sm:$0xff]
    %v187 = vld [vmem:[#allocation8 + $0x208] sm:$0xff]
    %v188 = vld [vmem:[#allocation8 + $0x210] sm:$0xff]
    %v189 = vld [vmem:[#allocation8 + $0x218] sm:$0xff]
    %v190 = vld [vmem:[#allocation8 + $0x220] sm:$0xff]
    %v191 = vld [vmem:[#allocation8 + $0x228] sm:$0xff]
    %v192 = vld [vmem:[#allocation8 + $0x230] sm:$0xff]
    %v193 = vld [vmem:[#allocation8 + $0x238] sm:$0xff]
    %v194 = vld [vmem:[#allocation8 + $0x240] sm:$0xff]
    %v195 = vld [vmem:[#allocation8 + $0x248] sm:$0xff]
    %v196 = vld [vmem:[#allocation8 + $0x250] sm:$0x33]
    %v197 = vld [vmem:[#allocation8 + $0x258] sm:$0x33]
    %v198 = vld [vmem:[#allocation9] sm:$0xff]
    %v199 = vld [vmem:[#allocation9 + $0x8] sm:$0xff]
    %v200 = vld [vmem:[#allocation9 + $0x10] sm:$0xff]
    %v201 = vld [vmem:[#allocation9 + $0x18] sm:$0xff]
    %v202 = vld [vmem:[#allocation9 + $0x20] sm:$0xff]
    %v203 = vld [vmem:[#allocation9 + $0x28] sm:$0xff]
    %v204 = vld [vmem:[#allocation9 + $0x30] sm:$0xff]
    %v205 = vld [vmem:[#allocation9 + $0x38] sm:$0xff]
    %v206 = vld [vmem:[#allocation9 + $0x40] sm:$0xff]
    %v207 = vld [vmem:[#allocation9 + $0x48] sm:$0xff]
    %v208 = vld [vmem:[#allocation9 + $0x50] sm:$0xff]
    %v209 = vld [vmem:[#allocation9 + $0x58] sm:$0xff]
    %v210 = vld [vmem:[#allocation9 + $0x60] sm:$0xff]
    %v211 = vld [vmem:[#allocation9 + $0x68] sm:$0xff]
    %v212 = vld [vmem:[#allocation9 + $0x70] sm:$0xff]
    %v213 = vld [vmem:[#allocation9 + $0x78] sm:$0xff]
    %v214 = vld [vmem:[#allocation9 + $0x80] sm:$0xff]
    %v215 = vld [vmem:[#allocation9 + $0x88] sm:$0xff]
    %v216 = vld [vmem:[#allocation9 + $0x90] sm:$0xff]
    %v217 = vld [vmem:[#allocation9 + $0x98] sm:$0xff]
    %v218 = vld [vmem:[#allocation9 + $0xa0] sm:$0xff]
    %v219 = vld [vmem:[#allocation9 + $0xa8] sm:$0xff]
    %v220 = vld [vmem:[#allocation9 + $0xb0] sm:$0xff]
    %v221 = vld [vmem:[#allocation9 + $0xb8] sm:$0xff]
    %v222 = vld [vmem:[#allocation9 + $0xc0] sm:$0xff]
    %v223 = vld [vmem:[#allocation9 + $0xc8] sm:$0xff]
    %v224 = vld [vmem:[#allocation9 + $0xd0] sm:$0xff]
    %v225 = vld [vmem:[#allocation9 + $0xd8] sm:$0xff]
    %v226 = vld [vmem:[#allocation9 + $0xe0] sm:$0xff]
    %v227 = vld [vmem:[#allocation9 + $0xe8] sm:$0xff]
    %v228 = vld [vmem:[#allocation9 + $0xf0] sm:$0xff]
    %v229 = vld [vmem:[#allocation9 + $0xf8] sm:$0xff]
    %v230 = vld [vmem:[#allocation9 + $0x100] sm:$0xff]
    %v231 = vld [vmem:[#allocation9 + $0x108] sm:$0xff]
    %v232 = vld [vmem:[#allocation9 + $0x110] sm:$0xff]
    %v233 = vld [vmem:[#allocation9 + $0x118] sm:$0xff]
    %v234 = vld [vmem:[#allocation9 + $0x120] sm:$0xff]
    %v235 = vld [vmem:[#allocation9 + $0x128] sm:$0xff]
    %v236 = vld [vmem:[#allocation9 + $0x130] sm:$0xff]
    %v237 = vld [vmem:[#allocation9 + $0x138] sm:$0xff]
    %v238 = vld [vmem:[#allocation9 + $0x140] sm:$0xff]
    %v239 = vld [vmem:[#allocation9 + $0x148] sm:$0xff]
    %v240 = vld [vmem:[#allocation9 + $0x150] sm:$0xff]
    %v241 = vld [vmem:[#allocation9 + $0x158] sm:$0xff]
    %v242 = vld [vmem:[#allocation9 + $0x160] sm:$0xff]
    %v243 = vld [vmem:[#allocation9 + $0x168] sm:$0xff]
    %v244 = vld [vmem:[#allocation9 + $0x170] sm:$0xff]
    %v245 = vld [vmem:[#allocation9 + $0x178] sm:$0xff]
    %v246 = vld [vmem:[#allocation9 + $0x180] sm:$0xff]
    %v247 = vld [vmem:[#allocation9 + $0x188] sm:$0xff]
    %v248 = vld [vmem:[#allocation9 + $0x190] sm:$0xff]
    %v249 = vld [vmem:[#allocation9 + $0x198] sm:$0xff]
    %v250 = vld [vmem:[#allocation9 + $0x1a0] sm:$0xff]
    %v251 = vld [vmem:[#allocation9 + $0x1a8] sm:$0xff]
    %v252 = vld [vmem:[#allocation9 + $0x1b0] sm:$0xff]
    %v253 = vld [vmem:[#allocation9 + $0x1b8] sm:$0xff]
    %v254 = vld [vmem:[#allocation9 + $0x1c0] sm:$0xff]
    %v255 = vld [vmem:[#allocation9 + $0x1c8] sm:$0xff]
    %v256 = vld [vmem:[#allocation9 + $0x1d0] sm:$0xff]
    %v257 = vld [vmem:[#allocation9 + $0x1d8] sm:$0xff]
    %v258 = vld [vmem:[#allocation9 + $0x1e0] sm:$0xff]
    %v259 = vld [vmem:[#allocation9 + $0x1e8] sm:$0xff]
    %v260 = vld [vmem:[#allocation9 + $0x1f0] sm:$0xff]
    %v261 = vld [vmem:[#allocation9 + $0x1f8] sm:$0xff]
    %v262 = vld [vmem:[#allocation9 + $0x200] sm:$0xff]
    %v263 = vld [vmem:[#allocation9 + $0x208] sm:$0xff]
    %v264 = vld [vmem:[#allocation9 + $0x210] sm:$0xff]
    %v265 = vld [vmem:[#allocation9 + $0x218] sm:$0xff]
    %v266 = vld [vmem:[#allocation9 + $0x220] sm:$0xff]
    %v267 = vld [vmem:[#allocation9 + $0x228] sm:$0xff]
    %v268 = vld [vmem:[#allocation9 + $0x230] sm:$0xff]
    %v269 = vld [vmem:[#allocation9 + $0x238] sm:$0xff]
    %v270 = vld [vmem:[#allocation9 + $0x240] sm:$0xff]
    %v271 = vld [vmem:[#allocation9 + $0x248] sm:$0xff]
    %v272 = vld [vmem:[#allocation9 + $0x250] sm:$0x33]
    %v273 = vld [vmem:[#allocation9 + $0x258] sm:$0x33]
    %v350 = vunpack.c.l.b16 %v198
    %v351 = vunpack.c.h.b16 %v198
    %v352 = vunpack.c.l.b16 %v199
    %v353 = vunpack.c.h.b16 %v199
    %v354 = vunpack.c.l.b16 %v200
    %v355 = vunpack.c.h.b16 %v200
    %v356 = vunpack.c.l.b16 %v201
    %v357 = vunpack.c.h.b16 %v201
    %v358 = vunpack.c.l.b16 %v202
    %v359 = vunpack.c.h.b16 %v202
    %v360 = vunpack.c.l.b16 %v203
    %v361 = vunpack.c.h.b16 %v203
    %v362 = vunpack.c.l.b16 %v204
    %v363 = vunpack.c.h.b16 %v204
    %v364 = vunpack.c.l.b16 %v205
    %v365 = vunpack.c.h.b16 %v205
    %v366 = vunpack.c.l.b16 %v206
    %v367 = vunpack.c.h.b16 %v206
    %v368 = vunpack.c.l.b16 %v207
    %v369 = vunpack.c.h.b16 %v207
    %v370 = vunpack.c.l.b16 %v208
    %v371 = vunpack.c.h.b16 %v208
    %v372 = vunpack.c.l.b16 %v209
    %v373 = vunpack.c.h.b16 %v209
    %v374 = vunpack.c.l.b16 %v210
    %v375 = vunpack.c.h.b16 %v210
    %v376 = vunpack.c.l.b16 %v211
    %v377 = vunpack.c.h.b16 %v211
    %v378 = vunpack.c.l.b16 %v212
    %v379 = vunpack.c.h.b16 %v212
    %v380 = vunpack.c.l.b16 %v213
    %v381 = vunpack.c.h.b16 %v213
    %v382 = vunpack.c.l.b16 %v214
    %v383 = vunpack.c.h.b16 %v214
    %v384 = vunpack.c.l.b16 %v215
    %v385 = vunpack.c.h.b16 %v215
    %v386 = vunpack.c.l.b16 %v216
    %v387 = vunpack.c.h.b16 %v216
    %v388 = vunpack.c.l.b16 %v217
    %v389 = vunpack.c.h.b16 %v217
    %v390 = vunpack.c.l.b16 %v218
    %v391 = vunpack.c.h.b16 %v218
    %v392 = vunpack.c.l.b16 %v219
    %v393 = vunpack.c.h.b16 %v219
    %v394 = vunpack.c.l.b16 %v220
    %v395 = vunpack.c.h.b16 %v220
    %v396 = vunpack.c.l.b16 %v221
    %v397 = vunpack.c.h.b16 %v221
    %v398 = vunpack.c.l.b16 %v222
    %v399 = vunpack.c.h.b16 %v222
    %v400 = vunpack.c.l.b16 %v223
    %v401 = vunpack.c.h.b16 %v223
    %v402 = vunpack.c.l.b16 %v224
    %v403 = vunpack.c.h.b16 %v224
    %v404 = vunpack.c.l.b16 %v225
    %v405 = vunpack.c.h.b16 %v225
    %v406 = vunpack.c.l.b16 %v226
    %v407 = vunpack.c.h.b16 %v226
    %v408 = vunpack.c.l.b16 %v227
    %v409 = vunpack.c.h.b16 %v227
    %v410 = vunpack.c.l.b16 %v228
    %v411 = vunpack.c.h.b16 %v228
    %v412 = vunpack.c.l.b16 %v229
    %v413 = vunpack.c.h.b16 %v229
    %v414 = vunpack.c.l.b16 %v230
    %v415 = vunpack.c.h.b16 %v230
    %v416 = vunpack.c.l.b16 %v231
    %v417 = vunpack.c.h.b16 %v231
    %v418 = vunpack.c.l.b16 %v232
    %v419 = vunpack.c.h.b16 %v232
    %v420 = vunpack.c.l.b16 %v233
    %v421 = vunpack.c.h.b16 %v233
    %v422 = vunpack.c.l.b16 %v234
    %v423 = vunpack.c.h.b16 %v234
    %v424 = vunpack.c.l.b16 %v235
    %v425 = vunpack.c.h.b16 %v235
    %v426 = vunpack.c.l.b16 %v236
    %v427 = vunpack.c.h.b16 %v236
    %v428 = vunpack.c.l.b16 %v237
    %v429 = vunpack.c.h.b16 %v237
    %v430 = vunpack.c.l.b16 %v238
    %v431 = vunpack.c.h.b16 %v238
    %v432 = vunpack.c.l.b16 %v239
    %v433 = vunpack.c.h.b16 %v239
    %v434 = vunpack.c.l.b16 %v240
    %v435 = vunpack.c.h.b16 %v240
    %v436 = vunpack.c.l.b16 %v241
    %v437 = vunpack.c.h.b16 %v241
    %v438 = vunpack.c.l.b16 %v242
    %v439 = vunpack.c.h.b16 %v242
    %v440 = vunpack.c.l.b16 %v243
    %v441 = vunpack.c.h.b16 %v243
    %v442 = vunpack.c.l.b16 %v244
    %v443 = vunpack.c.h.b16 %v244
    %v444 = vunpack.c.l.b16 %v245
    %v445 = vunpack.c.h.b16 %v245
    %v446 = vunpack.c.l.b16 %v246
    %v447 = vunpack.c.h.b16 %v246
    %v448 = vunpack.c.l.b16 %v247
    %v449 = vunpack.c.h.b16 %v247
    %v450 = vunpack.c.l.b16 %v248
    %v451 = vunpack.c.h.b16 %v248
    %v452 = vunpack.c.l.b16 %v249
    %v453 = vunpack.c.h.b16 %v249
    %v454 = vunpack.c.l.b16 %v250
    %v455 = vunpack.c.h.b16 %v250
    %v456 = vunpack.c.l.b16 %v251
    %v457 = vunpack.c.h.b16 %v251
    %v458 = vunpack.c.l.b16 %v252
    %v459 = vunpack.c.h.b16 %v252
    %v460 = vunpack.c.l.b16 %v253
    %v461 = vunpack.c.h.b16 %v253
    %v462 = vunpack.c.l.b16 %v254
    %v463 = vunpack.c.h.b16 %v254
    %v464 = vunpack.c.l.b16 %v255
    %v465 = vunpack.c.h.b16 %v255
    %v466 = vunpack.c.l.b16 %v256
    %v467 = vunpack.c.h.b16 %v256
    %v468 = vunpack.c.l.b16 %v257
    %v469 = vunpack.c.h.b16 %v257
    %v470 = vunpack.c.l.b16 %v258
    %v471 = vunpack.c.h.b16 %v258
    %v472 = vunpack.c.l.b16 %v259
    %v473 = vunpack.c.h.b16 %v259
    %v474 = vunpack.c.l.b16 %v260
    %v475 = vunpack.c.h.b16 %v260
    %v476 = vunpack.c.l.b16 %v261
    %v477 = vunpack.c.h.b16 %v261
    %v478 = vunpack.c.l.b16 %v262
    %v479 = vunpack.c.h.b16 %v262
    %v480 = vunpack.c.l.b16 %v263
    %v481 = vunpack.c.h.b16 %v263
    %v482 = vunpack.c.l.b16 %v264
    %v483 = vunpack.c.h.b16 %v264
    %v484 = vunpack.c.l.b16 %v265
    %v485 = vunpack.c.h.b16 %v265
    %v486 = vunpack.c.l.b16 %v266
    %v487 = vunpack.c.h.b16 %v266
    %v488 = vunpack.c.l.b16 %v267
    %v489 = vunpack.c.h.b16 %v267
    %v490 = vunpack.c.l.b16 %v268
    %v491 = vunpack.c.h.b16 %v268
    %v492 = vunpack.c.l.b16 %v269
    %v493 = vunpack.c.h.b16 %v269
    %v494 = vunpack.c.l.b16 %v270
    %v495 = vunpack.c.h.b16 %v270
    %v496 = vunpack.c.l.b16 %v271
    %v497 = vunpack.c.h.b16 %v271
    %v498 = vunpack.c.l.b16 %v272
    %v499 = vunpack.c.h.b16 %v272
    %v500 = vunpack.c.l.b16 %v273
    %v501 = vunpack.c.h.b16 %v273
    %v502 = vpack.c.b16 %v354, %v350
    %v503 = vpack.c.b16 %v355, %v351
    %v504 = vpack.c.b16 %v356, %v352
    %v505 = vpack.c.b16 %v357, %v353
    %v506 = vpack.c.b16 %v362, %v358
    %v507 = vpack.c.b16 %v363, %v359
    %v508 = vpack.c.b16 %v364, %v360
    %v509 = vpack.c.b16 %v365, %v361
    %v510 = vpack.c.b16 %v370, %v366
    %v511 = vpack.c.b16 %v371, %v367
    %v512 = vpack.c.b16 %v372, %v368
    %v513 = vpack.c.b16 %v373, %v369
    %v514 = vpack.c.b16 %v378, %v374
    %v515 = vpack.c.b16 %v379, %v375
    %v516 = vpack.c.b16 %v380, %v376
    %v517 = vpack.c.b16 %v381, %v377
    %v518 = vpack.c.b16 %v386, %v382
    %v519 = vpack.c.b16 %v387, %v383
    %v520 = vpack.c.b16 %v388, %v384
    %v521 = vpack.c.b16 %v389, %v385
    %v522 = vpack.c.b16 %v394, %v390
    %v523 = vpack.c.b16 %v395, %v391
    %v524 = vpack.c.b16 %v396, %v392
    %v525 = vpack.c.b16 %v397, %v393
    %v526 = vpack.c.b16 %v402, %v398
    %v527 = vpack.c.b16 %v403, %v399
    %v528 = vpack.c.b16 %v404, %v400
    %v529 = vpack.c.b16 %v405, %v401
    %v530 = vpack.c.b16 %v410, %v406
    %v531 = vpack.c.b16 %v411, %v407
    %v532 = vpack.c.b16 %v412, %v408
    %v533 = vpack.c.b16 %v413, %v409
    %v534 = vpack.c.b16 %v418, %v414
    %v535 = vpack.c.b16 %v419, %v415
    %v536 = vpack.c.b16 %v420, %v416
    %v537 = vpack.c.b16 %v421, %v417
    %v538 = vpack.c.b16 %v426, %v422
    %v539 = vpack.c.b16 %v427, %v423
    %v540 = vpack.c.b16 %v428, %v424
    %v541 = vpack.c.b16 %v429, %v425
    %v542 = vpack.c.b16 %v434, %v430
    %v543 = vpack.c.b16 %v435, %v431
    %v544 = vpack.c.b16 %v436, %v432
    %v545 = vpack.c.b16 %v437, %v433
    %v546 = vpack.c.b16 %v442, %v438
    %v547 = vpack.c.b16 %v443, %v439
    %v548 = vpack.c.b16 %v444, %v440
    %v549 = vpack.c.b16 %v445, %v441
    %v550 = vpack.c.b16 %v450, %v446
    %v551 = vpack.c.b16 %v451, %v447
    %v552 = vpack.c.b16 %v452, %v448
    %v553 = vpack.c.b16 %v453, %v449
    %v554 = vpack.c.b16 %v458, %v454
    %v555 = vpack.c.b16 %v459, %v455
    %v556 = vpack.c.b16 %v460, %v456
    %v557 = vpack.c.b16 %v461, %v457
    %v558 = vpack.c.b16 %v466, %v462
    %v559 = vpack.c.b16 %v467, %v463
    %v560 = vpack.c.b16 %v468, %v464
    %v561 = vpack.c.b16 %v469, %v465
    %v562 = vpack.c.b16 %v474, %v470
    %v563 = vpack.c.b16 %v475, %v471
    %v564 = vpack.c.b16 %v476, %v472
    %v565 = vpack.c.b16 %v477, %v473
    %v566 = vpack.c.b16 %v482, %v478
    %v567 = vpack.c.b16 %v483, %v479
    %v568 = vpack.c.b16 %v484, %v480
    %v569 = vpack.c.b16 %v485, %v481
    %v570 = vpack.c.b16 %v490, %v486
    %v571 = vpack.c.b16 %v491, %v487
    %v572 = vpack.c.b16 %v492, %v488
    %v573 = vpack.c.b16 %v493, %v489
    %v574 = vpack.c.b16 %v498, %v494
    %v575 = vpack.c.b16 %v499, %v495
    %v576 = vpack.c.b16 %v500, %v496
    %v577 = vpack.c.b16 %v501, %v497
    %vm650 = vcmask 359424
    %v652 = vsel %vm650, %v121, 0
    %vm654 = vcmask 1045504
    %v656 = vsel %vm654, %v574, 0
    %v659 = vsel %vm654, %v575, 0
    %v662 = vsel %vm654, %v576, 0
    %v665 = vsel %vm654, %v577, 0
    %667 = vmatpush.bf16.msra.mxu0 %v530
    %668 = vmatpush.bf16.msra.mxu0 %v526
    %669 = vmatpush.bf16.msra.mxu0 %v522
    %670 = vmatpush.bf16.msra.mxu0 %v518
    %671 = vmatpush.bf16.msra.mxu0 %v514
    %672 = vmatpush.bf16.msra.mxu0 %v510
    %673 = vmatpush.bf16.msra.mxu0 %v506
    %674 = vmatpush.bf16.msra.mxu0 %v502
    %675 = vmatmul.bf16.gmra.mxu0 %v119
    %v676 = vpop.f32.mrf.mxu0
    %v677 = vadd.f32 0.0, %v676
    %v678 = vpop.f32.mrf.mxu0
    %679 = vdwg.mxu0
    %680 = vmatpush.bf16.msra.mxu0 %v562
    %681 = vmatpush.bf16.msra.mxu0 %v558
    %682 = vmatpush.bf16.msra.mxu0 %v554
    %683 = vmatpush.bf16.msra.mxu0 %v550
    %684 = vmatpush.bf16.msra.mxu0 %v546
    %685 = vmatpush.bf16.msra.mxu0 %v542
    %686 = vmatpush.bf16.msra.mxu0 %v538
    %687 = vmatpush.bf16.msra.mxu0 %v534
    %688 = vmatmul.bf16.gmra.mxu0 %v120
    %v689 = vpop.f32.mrf.mxu0
    %v690 = vadd.f32 %v677, %v689
    %v691 = vpop.f32.mrf.mxu0
    %692 = vdwg.mxu0
    %693 = vmatpush.bf16.msra.mxu0 0
    %694 = vmatpush.bf16.msra.mxu0 0
    %695 = vmatpush.bf16.msra.mxu0 0
    %696 = vmatpush.bf16.msra.mxu0 0
    %697 = vmatpush.bf16.msra.mxu0 0
    %698 = vmatpush.bf16.msra.mxu0 %v656
    %699 = vmatpush.bf16.msra.mxu0 %v570
    %700 = vmatpush.bf16.msra.mxu0 %v566
    %701 = vmatmul.bf16.gmra.mxu0 %v652
    %v702 = vpop.f32.mrf.mxu0
    %v703 = vadd.f32 %v690, %v702
    %v704 = vpop.f32.mrf.mxu0
    %705 = vdwg.mxu0
    %706 = vmatpush.bf16.msra.mxu0 %v531
    %707 = vmatpush.bf16.msra.mxu0 %v527
    %708 = vmatpush.bf16.msra.mxu0 %v523
    %709 = vmatpush.bf16.msra.mxu0 %v519
    %710 = vmatpush.bf16.msra.mxu0 %v515
    %711 = vmatpush.bf16.msra.mxu0 %v511
    %712 = vmatpush.bf16.msra.mxu0 %v507
    %713 = vmatpush.bf16.msra.mxu0 %v503
    %714 = vmatmul.bf16.gmra.mxu0 %v119
    %v715 = vpop.f32.mrf.mxu0
    %v716 = vadd.f32 0.0, %v715
    %v717 = vpop.f32.mrf.mxu0
    %718 = vdwg.mxu0
    %719 = vmatpush.bf16.msra.mxu0 %v563
    %720 = vmatpush.bf16.msra.mxu0 %v559
    %721 = vmatpush.bf16.msra.mxu0 %v555
    %722 = vmatpush.bf16.msra.mxu0 %v551
    %723 = vmatpush.bf16.msra.mxu0 %v547
    %724 = vmatpush.bf16.msra.mxu0 %v543
    %725 = vmatpush.bf16.msra.mxu0 %v539
    %726 = vmatpush.bf16.msra.mxu0 %v535
    %727 = vmatmul.bf16.gmra.mxu0 %v120
    %v728 = vpop.f32.mrf.mxu0
    %v729 = vadd.f32 %v716, %v728
    %v730 = vpop.f32.mrf.mxu0
    %731 = vdwg.mxu0
    %732 = vmatpush.bf16.msra.mxu0 0
    %733 = vmatpush.bf16.msra.mxu0 0
    %734 = vmatpush.bf16.msra.mxu0 0
    %735 = vmatpush.bf16.msra.mxu0 0
    %736 = vmatpush.bf16.msra.mxu0 0
    %737 = vmatpush.bf16.msra.mxu0 %v659
    %738 = vmatpush.bf16.msra.mxu0 %v571
    %739 = vmatpush.bf16.msra.mxu0 %v567
    %740 = vmatmul.bf16.gmra.mxu0 %v652
    %v741 = vpop.f32.mrf.mxu0
    %v742 = vadd.f32 %v729, %v741
    %v743 = vpop.f32.mrf.mxu0
    %744 = vdwg.mxu0
    %745 = vmatpush.bf16.msra.mxu0 %v532
    %746 = vmatpush.bf16.msra.mxu0 %v528
    %747 = vmatpush.bf16.msra.mxu0 %v524
    %748 = vmatpush.bf16.msra.mxu0 %v520
    %749 = vmatpush.bf16.msra.mxu0 %v516
    %750 = vmatpush.bf16.msra.mxu0 %v512
    %751 = vmatpush.bf16.msra.mxu0 %v508
    %752 = vmatpush.bf16.msra.mxu0 %v504
    %753 = vmatmul.bf16.gmra.mxu0 %v119
    %v754 = vpop.f32.mrf.mxu0
    %v755 = vadd.f32 0.0, %v754
    %v756 = vpop.f32.mrf.mxu0
    %757 = vdwg.mxu0
    %758 = vmatpush.bf16.msra.mxu0 %v564
    %759 = vmatpush.bf16.msra.mxu0 %v560
    %760 = vmatpush.bf16.msra.mxu0 %v556
    %761 = vmatpush.bf16.msra.mxu0 %v552
    %762 = vmatpush.bf16.msra.mxu0 %v548
    %763 = vmatpush.bf16.msra.mxu0 %v544
    %764 = vmatpush.bf16.msra.mxu0 %v540
    %765 = vmatpush.bf16.msra.mxu0 %v536
    %766 = vmatmul.bf16.gmra.mxu0 %v120
    %v767 = vpop.f32.mrf.mxu0
    %v768 = vadd.f32 %v755, %v767
    %v769 = vpop.f32.mrf.mxu0
    %770 = vdwg.mxu0
    %771 = vmatpush.bf16.msra.mxu0 0
    %772 = vmatpush.bf16.msra.mxu0 0
    %773 = vmatpush.bf16.msra.mxu0 0
    %774 = vmatpush.bf16.msra.mxu0 0
    %775 = vmatpush.bf16.msra.mxu0 0
    %776 = vmatpush.bf16.msra.mxu0 %v662
    %777 = vmatpush.bf16.msra.mxu0 %v572
    %778 = vmatpush.bf16.msra.mxu0 %v568
    %779 = vmatmul.bf16.gmra.mxu0 %v652
    %v780 = vpop.f32.mrf.mxu0
    %v781 = vadd.f32 %v768, %v780
    %v782 = vpop.f32.mrf.mxu0
    %783 = vdwg.mxu0
    %784 = vmatpush.bf16.msra.mxu0 %v533
    %785 = vmatpush.bf16.msra.mxu0 %v529
    %786 = vmatpush.bf16.msra.mxu0 %v525
    %787 = vmatpush.bf16.msra.mxu0 %v521
    %788 = vmatpush.bf16.msra.mxu0 %v517
    %789 = vmatpush.bf16.msra.mxu0 %v513
    %790 = vmatpush.bf16.msra.mxu0 %v509
    %791 = vmatpush.bf16.msra.mxu0 %v505
    %792 = vmatmul.bf16.gmra.mxu0 %v119
    %v793 = vpop.f32.mrf.mxu0
    %v794 = vadd.f32 0.0, %v793
    %v795 = vpop.f32.mrf.mxu0
    %796 = vdwg.mxu0
    %797 = vmatpush.bf16.msra.mxu0 %v565
    %798 = vmatpush.bf16.msra.mxu0 %v561
    %799 = vmatpush.bf16.msra.mxu0 %v557
    %800 = vmatpush.bf16.msra.mxu0 %v553
    %801 = vmatpush.bf16.msra.mxu0 %v549
    %802 = vmatpush.bf16.msra.mxu0 %v545
    %803 = vmatpush.bf16.msra.mxu0 %v541
    %804 = vmatpush.bf16.msra.mxu0 %v537
    %805 = vmatmul.bf16.gmra.mxu0 %v120
    %v806 = vpop.f32.mrf.mxu0
    %v807 = vadd.f32 %v794, %v806
    %v808 = vpop.f32.mrf.mxu0
    %809 = vdwg.mxu0
    %810 = vmatpush.bf16.msra.mxu0 0
    %811 = vmatpush.bf16.msra.mxu0 0
    %812 = vmatpush.bf16.msra.mxu0 0
    %813 = vmatpush.bf16.msra.mxu0 0
    %814 = vmatpush.bf16.msra.mxu0 0
    %815 = vmatpush.bf16.msra.mxu0 %v665
    %816 = vmatpush.bf16.msra.mxu0 %v573
    %817 = vmatpush.bf16.msra.mxu0 %v569
    %818 = vmatmul.bf16.gmra.mxu0 %v652
    %v819 = vpop.f32.mrf.mxu0
    %v820 = vadd.f32 %v807, %v819
    %v821 = vpop.f32.mrf.mxu0
    %822 = vdwg.mxu0
    %v899 = vunpack.c.l.b16 %v122
    %v900 = vunpack.c.h.b16 %v122
    %v901 = vunpack.c.l.b16 %v123
    %v902 = vunpack.c.h.b16 %v123
    %v903 = vunpack.c.l.b16 %v124
    %v904 = vunpack.c.h.b16 %v124
    %v905 = vunpack.c.l.b16 %v125
    %v906 = vunpack.c.h.b16 %v125
    %v907 = vunpack.c.l.b16 %v126
    %v908 = vunpack.c.h.b16 %v126
    %v909 = vunpack.c.l.b16 %v127
    %v910 = vunpack.c.h.b16 %v127
    %v911 = vunpack.c.l.b16 %v128
    %v912 = vunpack.c.h.b16 %v128
    %v913 = vunpack.c.l.b16 %v129
    %v914 = vunpack.c.h.b16 %v129
    %v915 = vunpack.c.l.b16 %v130
    %v916 = vunpack.c.h.b16 %v130
    %v917 = vunpack.c.l.b16 %v131
    %v918 = vunpack.c.h.b16 %v131
    %v919 = vunpack.c.l.b16 %v132
    %v920 = vunpack.c.h.b16 %v132
    %v921 = vunpack.c.l.b16 %v133
    %v922 = vunpack.c.h.b16 %v133
    %v923 = vunpack.c.l.b16 %v134
    %v924 = vunpack.c.h.b16 %v134
    %v925 = vunpack.c.l.b16 %v135
    %v926 = vunpack.c.h.b16 %v135
    %v927 = vunpack.c.l.b16 %v136
    %v928 = vunpack.c.h.b16 %v136
    %v929 = vunpack.c.l.b16 %v137
    %v930 = vunpack.c.h.b16 %v137
    %v931 = vunpack.c.l.b16 %v138
    %v932 = vunpack.c.h.b16 %v138
    %v933 = vunpack.c.l.b16 %v139
    %v934 = vunpack.c.h.b16 %v139
    %v935 = vunpack.c.l.b16 %v140
    %v936 = vunpack.c.h.b16 %v140
    %v937 = vunpack.c.l.b16 %v141
    %v938 = vunpack.c.h.b16 %v141
    %v939 = vunpack.c.l.b16 %v142
    %v940 = vunpack.c.h.b16 %v142
    %v941 = vunpack.c.l.b16 %v143
    %v942 = vunpack.c.h.b16 %v143
    %v943 = vunpack.c.l.b16 %v144
    %v944 = vunpack.c.h.b16 %v144
    %v945 = vunpack.c.l.b16 %v145
    %v946 = vunpack.c.h.b16 %v145
    %v947 = vunpack.c.l.b16 %v146
    %v948 = vunpack.c.h.b16 %v146
    %v949 = vunpack.c.l.b16 %v147
    %v950 = vunpack.c.h.b16 %v147
    %v951 = vunpack.c.l.b16 %v148
    %v952 = vunpack.c.h.b16 %v148
    %v953 = vunpack.c.l.b16 %v149
    %v954 = vunpack.c.h.b16 %v149
    %v955 = vunpack.c.l.b16 %v150
    %v956 = vunpack.c.h.b16 %v150
    %v957 = vunpack.c.l.b16 %v151
    %v958 = vunpack.c.h.b16 %v151
    %v959 = vunpack.c.l.b16 %v152
    %v960 = vunpack.c.h.b16 %v152
    %v961 = vunpack.c.l.b16 %v153
    %v962 = vunpack.c.h.b16 %v153
    %v963 = vunpack.c.l.b16 %v154
    %v964 = vunpack.c.h.b16 %v154
    %v965 = vunpack.c.l.b16 %v155
    %v966 = vunpack.c.h.b16 %v155
    %v967 = vunpack.c.l.b16 %v156
    %v968 = vunpack.c.h.b16 %v156
    %v969 = vunpack.c.l.b16 %v157
    %v970 = vunpack.c.h.b16 %v157
    %v971 = vunpack.c.l.b16 %v158
    %v972 = vunpack.c.h.b16 %v158
    %v973 = vunpack.c.l.b16 %v159
    %v974 = vunpack.c.h.b16 %v159
    %v975 = vunpack.c.l.b16 %v160
    %v976 = vunpack.c.h.b16 %v160
    %v977 = vunpack.c.l.b16 %v161
    %v978 = vunpack.c.h.b16 %v161
    %v979 = vunpack.c.l.b16 %v162
    %v980 = vunpack.c.h.b16 %v162
    %v981 = vunpack.c.l.b16 %v163
    %v982 = vunpack.c.h.b16 %v163
    %v983 = vunpack.c.l.b16 %v164
    %v984 = vunpack.c.h.b16 %v164
    %v985 = vunpack.c.l.b16 %v165
    %v986 = vunpack.c.h.b16 %v165
    %v987 = vunpack.c.l.b16 %v166
    %v988 = vunpack.c.h.b16 %v166
    %v989 = vunpack.c.l.b16 %v167
    %v990 = vunpack.c.h.b16 %v167
    %v991 = vunpack.c.l.b16 %v168
    %v992 = vunpack.c.h.b16 %v168
    %v993 = vunpack.c.l.b16 %v169
    %v994 = vunpack.c.h.b16 %v169
    %v995 = vunpack.c.l.b16 %v170
    %v996 = vunpack.c.h.b16 %v170
    %v997 = vunpack.c.l.b16 %v171
    %v998 = vunpack.c.h.b16 %v171
    %v999 = vunpack.c.l.b16 %v172
    %v1000 = vunpack.c.h.b16 %v172
    %v1001 = vunpack.c.l.b16 %v173
    %v1002 = vunpack.c.h.b16 %v173
    %v1003 = vunpack.c.l.b16 %v174
    %v1004 = vunpack.c.h.b16 %v174
    %v1005 = vunpack.c.l.b16 %v175
    %v1006 = vunpack.c.h.b16 %v175
    %v1007 = vunpack.c.l.b16 %v176
    %v1008 = vunpack.c.h.b16 %v176
    %v1009 = vunpack.c.l.b16 %v177
    %v1010 = vunpack.c.h.b16 %v177
    %v1011 = vunpack.c.l.b16 %v178
    %v1012 = vunpack.c.h.b16 %v178
    %v1013 = vunpack.c.l.b16 %v179
    %v1014 = vunpack.c.h.b16 %v179
    %v1015 = vunpack.c.l.b16 %v180
    %v1016 = vunpack.c.h.b16 %v180
    %v1017 = vunpack.c.l.b16 %v181
    %v1018 = vunpack.c.h.b16 %v181
    %v1019 = vunpack.c.l.b16 %v182
    %v1020 = vunpack.c.h.b16 %v182
    %v1021 = vunpack.c.l.b16 %v183
    %v1022 = vunpack.c.h.b16 %v183
    %v1023 = vunpack.c.l.b16 %v184
    %v1024 = vunpack.c.h.b16 %v184
    %v1025 = vunpack.c.l.b16 %v185
    %v1026 = vunpack.c.h.b16 %v185
    %v1027 = vunpack.c.l.b16 %v186
    %v1028 = vunpack.c.h.b16 %v186
    %v1029 = vunpack.c.l.b16 %v187
    %v1030 = vunpack.c.h.b16 %v187
    %v1031 = vunpack.c.l.b16 %v188
    %v1032 = vunpack.c.h.b16 %v188
    %v1033 = vunpack.c.l.b16 %v189
    %v1034 = vunpack.c.h.b16 %v189
    %v1035 = vunpack.c.l.b16 %v190
    %v1036 = vunpack.c.h.b16 %v190
    %v1037 = vunpack.c.l.b16 %v191
    %v1038 = vunpack.c.h.b16 %v191
    %v1039 = vunpack.c.l.b16 %v192
    %v1040 = vunpack.c.h.b16 %v192
    %v1041 = vunpack.c.l.b16 %v193
    %v1042 = vunpack.c.h.b16 %v193
    %v1043 = vunpack.c.l.b16 %v194
    %v1044 = vunpack.c.h.b16 %v194
    %v1045 = vunpack.c.l.b16 %v195
    %v1046 = vunpack.c.h.b16 %v195
    %v1047 = vunpack.c.l.b16 %v196
    %v1048 = vunpack.c.h.b16 %v196
    %v1049 = vunpack.c.l.b16 %v197
    %v1050 = vunpack.c.h.b16 %v197
    %v1051 = vpack.c.b16 %v903, %v899
    %v1052 = vpack.c.b16 %v904, %v900
    %v1053 = vpack.c.b16 %v905, %v901
    %v1054 = vpack.c.b16 %v906, %v902
    %v1055 = vpack.c.b16 %v911, %v907
    %v1056 = vpack.c.b16 %v912, %v908
    %v1057 = vpack.c.b16 %v913, %v909
    %v1058 = vpack.c.b16 %v914, %v910
    %v1059 = vpack.c.b16 %v919, %v915
    %v1060 = vpack.c.b16 %v920, %v916
    %v1061 = vpack.c.b16 %v921, %v917
    %v1062 = vpack.c.b16 %v922, %v918
    %v1063 = vpack.c.b16 %v927, %v923
    %v1064 = vpack.c.b16 %v928, %v924
    %v1065 = vpack.c.b16 %v929, %v925
    %v1066 = vpack.c.b16 %v930, %v926
    %v1067 = vpack.c.b16 %v935, %v931
    %v1068 = vpack.c.b16 %v936, %v932
    %v1069 = vpack.c.b16 %v937, %v933
    %v1070 = vpack.c.b16 %v938, %v934
    %v1071 = vpack.c.b16 %v943, %v939
    %v1072 = vpack.c.b16 %v944, %v940
    %v1073 = vpack.c.b16 %v945, %v941
    %v1074 = vpack.c.b16 %v946, %v942
    %v1075 = vpack.c.b16 %v951, %v947
    %v1076 = vpack.c.b16 %v952, %v948
    %v1077 = vpack.c.b16 %v953, %v949
    %v1078 = vpack.c.b16 %v954, %v950
    %v1079 = vpack.c.b16 %v959, %v955
    %v1080 = vpack.c.b16 %v960, %v956
    %v1081 = vpack.c.b16 %v961, %v957
    %v1082 = vpack.c.b16 %v962, %v958
    %v1083 = vpack.c.b16 %v967, %v963
    %v1084 = vpack.c.b16 %v968, %v964
    %v1085 = vpack.c.b16 %v969, %v965
    %v1086 = vpack.c.b16 %v970, %v966
    %v1087 = vpack.c.b16 %v975, %v971
    %v1088 = vpack.c.b16 %v976, %v972
    %v1089 = vpack.c.b16 %v977, %v973
    %v1090 = vpack.c.b16 %v978, %v974
    %v1091 = vpack.c.b16 %v983, %v979
    %v1092 = vpack.c.b16 %v984, %v980
    %v1093 = vpack.c.b16 %v985, %v981
    %v1094 = vpack.c.b16 %v986, %v982
    %v1095 = vpack.c.b16 %v991, %v987
    %v1096 = vpack.c.b16 %v992, %v988
    %v1097 = vpack.c.b16 %v993, %v989
    %v1098 = vpack.c.b16 %v994, %v990
    %v1099 = vpack.c.b16 %v999, %v995
    %v1100 = vpack.c.b16 %v1000, %v996
    %v1101 = vpack.c.b16 %v1001, %v997
    %v1102 = vpack.c.b16 %v1002, %v998
    %v1103 = vpack.c.b16 %v1007, %v1003
    %v1104 = vpack.c.b16 %v1008, %v1004
    %v1105 = vpack.c.b16 %v1009, %v1005
    %v1106 = vpack.c.b16 %v1010, %v1006
    %v1107 = vpack.c.b16 %v1015, %v1011
    %v1108 = vpack.c.b16 %v1016, %v1012
    %v1109 = vpack.c.b16 %v1017, %v1013
    %v1110 = vpack.c.b16 %v1018, %v1014
    %v1111 = vpack.c.b16 %v1023, %v1019
    %v1112 = vpack.c.b16 %v1024, %v1020
    %v1113 = vpack.c.b16 %v1025, %v1021
    %v1114 = vpack.c.b16 %v1026, %v1022
    %v1115 = vpack.c.b16 %v1031, %v1027
    %v1116 = vpack.c.b16 %v1032, %v1028
    %v1117 = vpack.c.b16 %v1033, %v1029
    %v1118 = vpack.c.b16 %v1034, %v1030
    %v1119 = vpack.c.b16 %v1039, %v1035
    %v1120 = vpack.c.b16 %v1040, %v1036
    %v1121 = vpack.c.b16 %v1041, %v1037
    %v1122 = vpack.c.b16 %v1042, %v1038
    %v1123 = vpack.c.b16 %v1047, %v1043
    %v1124 = vpack.c.b16 %v1048, %v1044
    %v1125 = vpack.c.b16 %v1049, %v1045
    %v1126 = vpack.c.b16 %v1050, %v1046
    %v1200 = vsel %vm650, %v115, 0
    %v1203 = vsel %vm654, %v1123, 0
    %v1206 = vsel %vm654, %v1124, 0
    %v1209 = vsel %vm654, %v1125, 0
    %v1212 = vsel %vm654, %v1126, 0
    %1214 = vmatpush.bf16.msra.mxu0 %v1079
    %1215 = vmatpush.bf16.msra.mxu0 %v1075
    %1216 = vmatpush.bf16.msra.mxu0 %v1071
    %1217 = vmatpush.bf16.msra.mxu0 %v1067
    %1218 = vmatpush.bf16.msra.mxu0 %v1063
    %1219 = vmatpush.bf16.msra.mxu0 %v1059
    %1220 = vmatpush.bf16.msra.mxu0 %v1055
    %1221 = vmatpush.bf16.msra.mxu0 %v1051
    %1222 = vmatmul.bf16.gmra.mxu0 %v113
    %v1223 = vpop.f32.mrf.mxu0
    %v1224 = vadd.f32 %v703, %v1223
    %v1225 = vpop.f32.mrf.mxu0
    %1226 = vdwg.mxu0
    %1227 = vmatpush.bf16.msra.mxu0 %v1111
    %1228 = vmatpush.bf16.msra.mxu0 %v1107
    %1229 = vmatpush.bf16.msra.mxu0 %v1103
    %1230 = vmatpush.bf16.msra.mxu0 %v1099
    %1231 = vmatpush.bf16.msra.mxu0 %v1095
    %1232 = vmatpush.bf16.msra.mxu0 %v1091
    %1233 = vmatpush.bf16.msra.mxu0 %v1087
    %1234 = vmatpush.bf16.msra.mxu0 %v1083
    %1235 = vmatmul.bf16.gmra.mxu0 %v114
    %v1236 = vpop.f32.mrf.mxu0
    %v1237 = vadd.f32 %v1224, %v1236
    %v1238 = vpop.f32.mrf.mxu0
    %1239 = vdwg.mxu0
    %1240 = vmatpush.bf16.msra.mxu0 0
    %1241 = vmatpush.bf16.msra.mxu0 0
    %1242 = vmatpush.bf16.msra.mxu0 0
    %1243 = vmatpush.bf16.msra.mxu0 0
    %1244 = vmatpush.bf16.msra.mxu0 0
    %1245 = vmatpush.bf16.msra.mxu0 %v1203
    %1246 = vmatpush.bf16.msra.mxu0 %v1119
    %1247 = vmatpush.bf16.msra.mxu0 %v1115
    %1248 = vmatmul.bf16.gmra.mxu0 %v1200
    %v1249 = vpop.f32.mrf.mxu0
    %v1250 = vadd.f32 %v1237, %v1249
    %v1251 = vpop.f32.mrf.mxu0
    %1252 = vdwg.mxu0
    %1253 = vmatpush.bf16.msra.mxu0 %v1080
    %1254 = vmatpush.bf16.msra.mxu0 %v1076
    %1255 = vmatpush.bf16.msra.mxu0 %v1072
    %1256 = vmatpush.bf16.msra.mxu0 %v1068
    %1257 = vmatpush.bf16.msra.mxu0 %v1064
    %1258 = vmatpush.bf16.msra.mxu0 %v1060
    %1259 = vmatpush.bf16.msra.mxu0 %v1056
    %1260 = vmatpush.bf16.msra.mxu0 %v1052
    %1261 = vmatmul.bf16.gmra.mxu0 %v113
    %v1262 = vpop.f32.mrf.mxu0
    %v1263 = vadd.f32 %v742, %v1262
    %v1264 = vpop.f32.mrf.mxu0
    %1265 = vdwg.mxu0
    %1266 = vmatpush.bf16.msra.mxu0 %v1112
    %1267 = vmatpush.bf16.msra.mxu0 %v1108
    %1268 = vmatpush.bf16.msra.mxu0 %v1104
    %1269 = vmatpush.bf16.msra.mxu0 %v1100
    %1270 = vmatpush.bf16.msra.mxu0 %v1096
    %1271 = vmatpush.bf16.msra.mxu0 %v1092
    %1272 = vmatpush.bf16.msra.mxu0 %v1088
    %1273 = vmatpush.bf16.msra.mxu0 %v1084
    %1274 = vmatmul.bf16.gmra.mxu0 %v114
    %v1275 = vpop.f32.mrf.mxu0
    %v1276 = vadd.f32 %v1263, %v1275
    %v1277 = vpop.f32.mrf.mxu0
    %1278 = vdwg.mxu0
    %1279 = vmatpush.bf16.msra.mxu0 0
    %1280 = vmatpush.bf16.msra.mxu0 0
    %1281 = vmatpush.bf16.msra.mxu0 0
    %1282 = vmatpush.bf16.msra.mxu0 0
    %1283 = vmatpush.bf16.msra.mxu0 0
    %1284 = vmatpush.bf16.msra.mxu0 %v1206
    %1285 = vmatpush.bf16.msra.mxu0 %v1120
    %1286 = vmatpush.bf16.msra.mxu0 %v1116
    %1287 = vmatmul.bf16.gmra.mxu0 %v1200
    %v1288 = vpop.f32.mrf.mxu0
    %v1289 = vadd.f32 %v1276, %v1288
    %v1290 = vpop.f32.mrf.mxu0
    %1291 = vdwg.mxu0
    %1292 = vmatpush.bf16.msra.mxu0 %v1081
    %1293 = vmatpush.bf16.msra.mxu0 %v1077
    %1294 = vmatpush.bf16.msra.mxu0 %v1073
    %1295 = vmatpush.bf16.msra.mxu0 %v1069
    %1296 = vmatpush.bf16.msra.mxu0 %v1065
    %1297 = vmatpush.bf16.msra.mxu0 %v1061
    %1298 = vmatpush.bf16.msra.mxu0 %v1057
    %1299 = vmatpush.bf16.msra.mxu0 %v1053
    %1300 = vmatmul.bf16.gmra.mxu0 %v113
    %v1301 = vpop.f32.mrf.mxu0
    %v1302 = vadd.f32 %v781, %v1301
    %v1303 = vpop.f32.mrf.mxu0
    %1304 = vdwg.mxu0
    %1305 = vmatpush.bf16.msra.mxu0 %v1113
    %1306 = vmatpush.bf16.msra.mxu0 %v1109
    %1307 = vmatpush.bf16.msra.mxu0 %v1105
    %1308 = vmatpush.bf16.msra.mxu0 %v1101
    %1309 = vmatpush.bf16.msra.mxu0 %v1097
    %1310 = vmatpush.bf16.msra.mxu0 %v1093
    %1311 = vmatpush.bf16.msra.mxu0 %v1089
    %1312 = vmatpush.bf16.msra.mxu0 %v1085
    %1313 = vmatmul.bf16.gmra.mxu0 %v114
    %v1314 = vpop.f32.mrf.mxu0
    %v1315 = vadd.f32 %v1302, %v1314
    %v1316 = vpop.f32.mrf.mxu0
    %1317 = vdwg.mxu0
    %1318 = vmatpush.bf16.msra.mxu0 0
    %1319 = vmatpush.bf16.msra.mxu0 0
    %1320 = vmatpush.bf16.msra.mxu0 0
    %1321 = vmatpush.bf16.msra.mxu0 0
    %1322 = vmatpush.bf16.msra.mxu0 0
    %1323 = vmatpush.bf16.msra.mxu0 %v1209
    %1324 = vmatpush.bf16.msra.mxu0 %v1121
    %1325 = vmatpush.bf16.msra.mxu0 %v1117
    %1326 = vmatmul.bf16.gmra.mxu0 %v1200
    %v1327 = vpop.f32.mrf.mxu0
    %v1328 = vadd.f32 %v1315, %v1327
    %v1329 = vpop.f32.mrf.mxu0
    %1330 = vdwg.mxu0
    %1331 = vmatpush.bf16.msra.mxu0 %v1082
    %1332 = vmatpush.bf16.msra.mxu0 %v1078
    %1333 = vmatpush.bf16.msra.mxu0 %v1074
    %1334 = vmatpush.bf16.msra.mxu0 %v1070
    %1335 = vmatpush.bf16.msra.mxu0 %v1066
    %1336 = vmatpush.bf16.msra.mxu0 %v1062
    %1337 = vmatpush.bf16.msra.mxu0 %v1058
    %1338 = vmatpush.bf16.msra.mxu0 %v1054
    %1339 = vmatmul.bf16.gmra.mxu0 %v113
    %v1340 = vpop.f32.mrf.mxu0
    %v1341 = vadd.f32 %v820, %v1340
    %v1342 = vpop.f32.mrf.mxu0
    %1343 = vdwg.mxu0
    %1344 = vmatpush.bf16.msra.mxu0 %v1114
    %1345 = vmatpush.bf16.msra.mxu0 %v1110
    %1346 = vmatpush.bf16.msra.mxu0 %v1106
    %1347 = vmatpush.bf16.msra.mxu0 %v1102
    %1348 = vmatpush.bf16.msra.mxu0 %v1098
    %1349 = vmatpush.bf16.msra.mxu0 %v1094
    %1350 = vmatpush.bf16.msra.mxu0 %v1090
    %1351 = vmatpush.bf16.msra.mxu0 %v1086
    %1352 = vmatmul.bf16.gmra.mxu0 %v114
    %v1353 = vpop.f32.mrf.mxu0
    %v1354 = vadd.f32 %v1341, %v1353
    %v1355 = vpop.f32.mrf.mxu0
    %1356 = vdwg.mxu0
    %1357 = vmatpush.bf16.msra.mxu0 0
    %1358 = vmatpush.bf16.msra.mxu0 0
    %1359 = vmatpush.bf16.msra.mxu0 0
    %1360 = vmatpush.bf16.msra.mxu0 0
    %1361 = vmatpush.bf16.msra.mxu0 0
    %1362 = vmatpush.bf16.msra.mxu0 %v1212
    %1363 = vmatpush.bf16.msra.mxu0 %v1122
    %1364 = vmatpush.bf16.msra.mxu0 %v1118
    %1365 = vmatmul.bf16.gmra.mxu0 %v1200
    %v1366 = vpop.f32.mrf.mxu0
    %v1367 = vadd.f32 %v1354, %v1366
    %v1368 = vpop.f32.mrf.mxu0
    %1369 = vdwg.mxu0
    %v1370 = vld [vmem:[%s4] sm:$0xf]
    %v1372 = vperm.slane %v1370, 0
    %v1373 = vperm.slane %v1370, 1
    %v1374 = vperm.slane %v1370, 2
    %v1375 = vperm.slane %v1370, 3
    %v1380 = vadd.f32 %v1250, %v1372
    %v1381 = vadd.f32 %v1289, %v1373
    %v1382 = vadd.f32 %v1328, %v1374
    %v1383 = vadd.f32 %v1367, %v1375
    %v1384 = vmax.f32 %v1380, 0.0
    %v1385 = vmax.f32 %v1381, 0.0
    %v1386 = vmax.f32 %v1382, 0.0
    %v1387 = vmax.f32 %v1383, 0.0
    %v1388 = vpack.c.bf16 %v1384, %v1384
    %v1389 = vpack.c.bf16 %v1385, %v1385
    %v1390 = vpack.c.bf16 %v1386, %v1386
    %v1391 = vpack.c.bf16 %v1387, %v1387
    %v1392 = vld [vmem:[#allocation11] sm:$0xff]
    %v1393 = vld [vmem:[#allocation11 + $0x8] sm:$0xff]
    %v1394 = vld [vmem:[#allocation11 + $0x10] sm:$0xff]
    %v1395 = vld [vmem:[#allocation11 + $0x18] sm:$0xff]
    %v1396 = vld [vmem:[#allocation11 + $0x20] sm:$0xff]
    %v1397 = vld [vmem:[#allocation11 + $0x28] sm:$0xff]
    %v1398 = vld [vmem:[#allocation11 + $0x30] sm:$0xff]
    %v1399 = vld [vmem:[#allocation11 + $0x38] sm:$0xff]
    %v1400 = vld [vmem:[#allocation11 + $0x40] sm:$0xff]
    %v1401 = vld [vmem:[#allocation11 + $0x48] sm:$0xff]
    %v1402 = vld [vmem:[#allocation11 + $0x50] sm:$0xff]
    %v1403 = vld [vmem:[#allocation11 + $0x58] sm:$0xff]
    %v1404 = vld [vmem:[#allocation11 + $0x60] sm:$0xff]
    %v1405 = vld [vmem:[#allocation11 + $0x68] sm:$0xff]
    %v1406 = vld [vmem:[#allocation11 + $0x70] sm:$0xff]
    %v1407 = vld [vmem:[#allocation11 + $0x78] sm:$0xff]
    %v1408 = vld [vmem:[#allocation11 + $0x80] sm:$0xff]
    %v1409 = vld [vmem:[#allocation11 + $0x88] sm:$0xff]
    %v1410 = vld [vmem:[#allocation11 + $0x90] sm:$0xff]
    %v1411 = vld [vmem:[#allocation11 + $0x98] sm:$0xff]
    %v1412 = vld [vmem:[#allocation11 + $0xa0] sm:$0xff]
    %v1413 = vld [vmem:[#allocation11 + $0xa8] sm:$0xff]
    %v1414 = vld [vmem:[#allocation11 + $0xb0] sm:$0xff]
    %v1415 = vld [vmem:[#allocation11 + $0xb8] sm:$0xff]
    %v1416 = vld [vmem:[#allocation11 + $0xc0] sm:$0xff]
    %v1417 = vld [vmem:[#allocation11 + $0xc8] sm:$0xff]
    %v1418 = vld [vmem:[#allocation11 + $0xd0] sm:$0xff]
    %v1419 = vld [vmem:[#allocation11 + $0xd8] sm:$0xff]
    %v1420 = vld [vmem:[#allocation11 + $0xe0] sm:$0xff]
    %v1421 = vld [vmem:[#allocation11 + $0xe8] sm:$0xff]
    %v1422 = vld [vmem:[#allocation11 + $0xf0] sm:$0xff]
    %v1423 = vld [vmem:[#allocation11 + $0xf8] sm:$0xff]
    %v1424 = vld [vmem:[#allocation11 + $0x100] sm:$0xff]
    %v1425 = vld [vmem:[#allocation11 + $0x108] sm:$0xff]
    %v1426 = vld [vmem:[#allocation11 + $0x110] sm:$0xff]
    %v1427 = vld [vmem:[#allocation11 + $0x118] sm:$0xff]
    %v1428 = vld [vmem:[#allocation11 + $0x120] sm:$0xff]
    %v1429 = vld [vmem:[#allocation11 + $0x128] sm:$0xff]
    %v1430 = vld [vmem:[#allocation11 + $0x130] sm:$0xff]
    %v1431 = vld [vmem:[#allocation11 + $0x138] sm:$0xff]
    %v1432 = vld [vmem:[#allocation11 + $0x140] sm:$0xff]
    %v1433 = vld [vmem:[#allocation11 + $0x148] sm:$0xff]
    %v1434 = vld [vmem:[#allocation11 + $0x150] sm:$0xff]
    %v1435 = vld [vmem:[#allocation11 + $0x158] sm:$0xff]
    %v1436 = vld [vmem:[#allocation11 + $0x160] sm:$0xff]
    %v1437 = vld [vmem:[#allocation11 + $0x168] sm:$0xff]
    %v1438 = vld [vmem:[#allocation11 + $0x170] sm:$0xff]
    %v1439 = vld [vmem:[#allocation11 + $0x178] sm:$0xff]
    %v1440 = vld [vmem:[#allocation11 + $0x180] sm:$0xff]
    %v1441 = vld [vmem:[#allocation11 + $0x188] sm:$0xff]
    %v1442 = vld [vmem:[#allocation11 + $0x190] sm:$0xff]
    %v1443 = vld [vmem:[#allocation11 + $0x198] sm:$0xff]
    %v1444 = vld [vmem:[#allocation11 + $0x1a0] sm:$0xff]
    %v1445 = vld [vmem:[#allocation11 + $0x1a8] sm:$0xff]
    %v1446 = vld [vmem:[#allocation11 + $0x1b0] sm:$0xff]
    %v1447 = vld [vmem:[#allocation11 + $0x1b8] sm:$0xff]
    %v1448 = vld [vmem:[#allocation11 + $0x1c0] sm:$0xff]
    %v1449 = vld [vmem:[#allocation11 + $0x1c8] sm:$0xff]
    %v1450 = vld [vmem:[#allocation11 + $0x1d0] sm:$0xff]
    %v1451 = vld [vmem:[#allocation11 + $0x1d8] sm:$0xff]
    %v1452 = vld [vmem:[#allocation11 + $0x1e0] sm:$0xff]
    %v1453 = vld [vmem:[#allocation11 + $0x1e8] sm:$0xff]
    %v1454 = vld [vmem:[#allocation11 + $0x1f0] sm:$0xff]
    %v1455 = vld [vmem:[#allocation11 + $0x1f8] sm:$0xff]
    %v1456 = vld [vmem:[%s6] sm:$0x3]
    %v1458 = vperm.slane %v1456, 0
    %v1459 = vperm.slane %v1456, 1
    %v1526 = vunpack.c.l.b16 %v1392
    %v1527 = vunpack.c.h.b16 %v1392
    %v1528 = vunpack.c.l.b16 %v1393
    %v1529 = vunpack.c.h.b16 %v1393
    %v1530 = vunpack.c.l.b16 %v1394
    %v1531 = vunpack.c.h.b16 %v1394
    %v1532 = vunpack.c.l.b16 %v1395
    %v1533 = vunpack.c.h.b16 %v1395
    %v1534 = vunpack.c.l.b16 %v1396
    %v1535 = vunpack.c.h.b16 %v1396
    %v1536 = vunpack.c.l.b16 %v1397
    %v1537 = vunpack.c.h.b16 %v1397
    %v1538 = vunpack.c.l.b16 %v1398
    %v1539 = vunpack.c.h.b16 %v1398
    %v1540 = vunpack.c.l.b16 %v1399
    %v1541 = vunpack.c.h.b16 %v1399
    %v1542 = vunpack.c.l.b16 %v1400
    %v1543 = vunpack.c.h.b16 %v1400
    %v1544 = vunpack.c.l.b16 %v1401
    %v1545 = vunpack.c.h.b16 %v1401
    %v1546 = vunpack.c.l.b16 %v1402
    %v1547 = vunpack.c.h.b16 %v1402
    %v1548 = vunpack.c.l.b16 %v1403
    %v1549 = vunpack.c.h.b16 %v1403
    %v1550 = vunpack.c.l.b16 %v1404
    %v1551 = vunpack.c.h.b16 %v1404
    %v1552 = vunpack.c.l.b16 %v1405
    %v1553 = vunpack.c.h.b16 %v1405
    %v1554 = vunpack.c.l.b16 %v1406
    %v1555 = vunpack.c.h.b16 %v1406
    %v1556 = vunpack.c.l.b16 %v1407
    %v1557 = vunpack.c.h.b16 %v1407
    %v1558 = vunpack.c.l.b16 %v1408
    %v1559 = vunpack.c.h.b16 %v1408
    %v1560 = vunpack.c.l.b16 %v1409
    %v1561 = vunpack.c.h.b16 %v1409
    %v1562 = vunpack.c.l.b16 %v1410
    %v1563 = vunpack.c.h.b16 %v1410
    %v1564 = vunpack.c.l.b16 %v1411
    %v1565 = vunpack.c.h.b16 %v1411
    %v1566 = vunpack.c.l.b16 %v1412
    %v1567 = vunpack.c.h.b16 %v1412
    %v1568 = vunpack.c.l.b16 %v1413
    %v1569 = vunpack.c.h.b16 %v1413
    %v1570 = vunpack.c.l.b16 %v1414
    %v1571 = vunpack.c.h.b16 %v1414
    %v1572 = vunpack.c.l.b16 %v1415
    %v1573 = vunpack.c.h.b16 %v1415
    %v1574 = vunpack.c.l.b16 %v1416
    %v1575 = vunpack.c.h.b16 %v1416
    %v1576 = vunpack.c.l.b16 %v1417
    %v1577 = vunpack.c.h.b16 %v1417
    %v1578 = vunpack.c.l.b16 %v1418
    %v1579 = vunpack.c.h.b16 %v1418
    %v1580 = vunpack.c.l.b16 %v1419
    %v1581 = vunpack.c.h.b16 %v1419
    %v1582 = vunpack.c.l.b16 %v1420
    %v1583 = vunpack.c.h.b16 %v1420
    %v1584 = vunpack.c.l.b16 %v1421
    %v1585 = vunpack.c.h.b16 %v1421
    %v1586 = vunpack.c.l.b16 %v1422
    %v1587 = vunpack.c.h.b16 %v1422
    %v1588 = vunpack.c.l.b16 %v1423
    %v1589 = vunpack.c.h.b16 %v1423
    %v1590 = vunpack.c.l.b16 %v1424
    %v1591 = vunpack.c.h.b16 %v1424
    %v1592 = vunpack.c.l.b16 %v1425
    %v1593 = vunpack.c.h.b16 %v1425
    %v1594 = vunpack.c.l.b16 %v1426
    %v1595 = vunpack.c.h.b16 %v1426
    %v1596 = vunpack.c.l.b16 %v1427
    %v1597 = vunpack.c.h.b16 %v1427
    %v1598 = vunpack.c.l.b16 %v1428
    %v1599 = vunpack.c.h.b16 %v1428
    %v1600 = vunpack.c.l.b16 %v1429
    %v1601 = vunpack.c.h.b16 %v1429
    %v1602 = vunpack.c.l.b16 %v1430
    %v1603 = vunpack.c.h.b16 %v1430
    %v1604 = vunpack.c.l.b16 %v1431
    %v1605 = vunpack.c.h.b16 %v1431
    %v1606 = vunpack.c.l.b16 %v1432
    %v1607 = vunpack.c.h.b16 %v1432
    %v1608 = vunpack.c.l.b16 %v1433
    %v1609 = vunpack.c.h.b16 %v1433
    %v1610 = vunpack.c.l.b16 %v1434
    %v1611 = vunpack.c.h.b16 %v1434
    %v1612 = vunpack.c.l.b16 %v1435
    %v1613 = vunpack.c.h.b16 %v1435
    %v1614 = vunpack.c.l.b16 %v1436
    %v1615 = vunpack.c.h.b16 %v1436
    %v1616 = vunpack.c.l.b16 %v1437
    %v1617 = vunpack.c.h.b16 %v1437
    %v1618 = vunpack.c.l.b16 %v1438
    %v1619 = vunpack.c.h.b16 %v1438
    %v1620 = vunpack.c.l.b16 %v1439
    %v1621 = vunpack.c.h.b16 %v1439
    %v1622 = vunpack.c.l.b16 %v1440
    %v1623 = vunpack.c.h.b16 %v1440
    %v1624 = vunpack.c.l.b16 %v1441
    %v1625 = vunpack.c.h.b16 %v1441
    %v1626 = vunpack.c.l.b16 %v1442
    %v1627 = vunpack.c.h.b16 %v1442
    %v1628 = vunpack.c.l.b16 %v1443
    %v1629 = vunpack.c.h.b16 %v1443
    %v1630 = vunpack.c.l.b16 %v1444
    %v1631 = vunpack.c.h.b16 %v1444
    %v1632 = vunpack.c.l.b16 %v1445
    %v1633 = vunpack.c.h.b16 %v1445
    %v1634 = vunpack.c.l.b16 %v1446
    %v1635 = vunpack.c.h.b16 %v1446
    %v1636 = vunpack.c.l.b16 %v1447
    %v1637 = vunpack.c.h.b16 %v1447
    %v1638 = vunpack.c.l.b16 %v1448
    %v1639 = vunpack.c.h.b16 %v1448
    %v1640 = vunpack.c.l.b16 %v1449
    %v1641 = vunpack.c.h.b16 %v1449
    %v1642 = vunpack.c.l.b16 %v1450
    %v1643 = vunpack.c.h.b16 %v1450
    %v1644 = vunpack.c.l.b16 %v1451
    %v1645 = vunpack.c.h.b16 %v1451
    %v1646 = vunpack.c.l.b16 %v1452
    %v1647 = vunpack.c.h.b16 %v1452
    %v1648 = vunpack.c.l.b16 %v1453
    %v1649 = vunpack.c.h.b16 %v1453
    %v1650 = vunpack.c.l.b16 %v1454
    %v1651 = vunpack.c.h.b16 %v1454
    %v1652 = vunpack.c.l.b16 %v1455
    %v1653 = vunpack.c.h.b16 %v1455
    %v1654 = vpack.c.b16 %v1528, %v1526
    %v1655 = vpack.c.b16 %v1529, %v1527
    %v1656 = vpack.c.b16 %v1532, %v1530
    %v1657 = vpack.c.b16 %v1533, %v1531
    %v1658 = vpack.c.b16 %v1536, %v1534
    %v1659 = vpack.c.b16 %v1537, %v1535
    %v1660 = vpack.c.b16 %v1540, %v1538
    %v1661 = vpack.c.b16 %v1541, %v1539
    %v1662 = vpack.c.b16 %v1544, %v1542
    %v1663 = vpack.c.b16 %v1545, %v1543
    %v1664 = vpack.c.b16 %v1548, %v1546
    %v1665 = vpack.c.b16 %v1549, %v1547
    %v1666 = vpack.c.b16 %v1552, %v1550
    %v1667 = vpack.c.b16 %v1553, %v1551
    %v1668 = vpack.c.b16 %v1556, %v1554
    %v1669 = vpack.c.b16 %v1557, %v1555
    %v1670 = vpack.c.b16 %v1560, %v1558
    %v1671 = vpack.c.b16 %v1561, %v1559
    %v1672 = vpack.c.b16 %v1564, %v1562
    %v1673 = vpack.c.b16 %v1565, %v1563
    %v1674 = vpack.c.b16 %v1568, %v1566
    %v1675 = vpack.c.b16 %v1569, %v1567
    %v1676 = vpack.c.b16 %v1572, %v1570
    %v1677 = vpack.c.b16 %v1573, %v1571
    %v1678 = vpack.c.b16 %v1576, %v1574
    %v1679 = vpack.c.b16 %v1577, %v1575
    %v1680 = vpack.c.b16 %v1580, %v1578
    %v1681 = vpack.c.b16 %v1581, %v1579
    %v1682 = vpack.c.b16 %v1584, %v1582
    %v1683 = vpack.c.b16 %v1585, %v1583
    %v1684 = vpack.c.b16 %v1588, %v1586
    %v1685 = vpack.c.b16 %v1589, %v1587
    %v1686 = vpack.c.b16 %v1592, %v1590
    %v1687 = vpack.c.b16 %v1593, %v1591
    %v1688 = vpack.c.b16 %v1596, %v1594
    %v1689 = vpack.c.b16 %v1597, %v1595
    %v1690 = vpack.c.b16 %v1600, %v1598
    %v1691 = vpack.c.b16 %v1601, %v1599
    %v1692 = vpack.c.b16 %v1604, %v1602
    %v1693 = vpack.c.b16 %v1605, %v1603
    %v1694 = vpack.c.b16 %v1608, %v1606
    %v1695 = vpack.c.b16 %v1609, %v1607
    %v1696 = vpack.c.b16 %v1612, %v1610
    %v1697 = vpack.c.b16 %v1613, %v1611
    %v1698 = vpack.c.b16 %v1616, %v1614
    %v1699 = vpack.c.b16 %v1617, %v1615
    %v1700 = vpack.c.b16 %v1620, %v1618
    %v1701 = vpack.c.b16 %v1621, %v1619
    %v1702 = vpack.c.b16 %v1624, %v1622
    %v1703 = vpack.c.b16 %v1625, %v1623
    %v1704 = vpack.c.b16 %v1628, %v1626
    %v1705 = vpack.c.b16 %v1629, %v1627
    %v1706 = vpack.c.b16 %v1632, %v1630
    %v1707 = vpack.c.b16 %v1633, %v1631
    %v1708 = vpack.c.b16 %v1636, %v1634
    %v1709 = vpack.c.b16 %v1637, %v1635
    %v1710 = vpack.c.b16 %v1640, %v1638
    %v1711 = vpack.c.b16 %v1641, %v1639
    %v1712 = vpack.c.b16 %v1644, %v1642
    %v1713 = vpack.c.b16 %v1645, %v1643
    %v1714 = vpack.c.b16 %v1648, %v1646
    %v1715 = vpack.c.b16 %v1649, %v1647
    %v1716 = vpack.c.b16 %v1652, %v1650
    %v1717 = vpack.c.b16 %v1653, %v1651
    %1782 = vmatpush.bf16.msra.mxu0 %v1668
    %1783 = vmatpush.bf16.msra.mxu0 %v1666
    %1784 = vmatpush.bf16.msra.mxu0 %v1664
    %1785 = vmatpush.bf16.msra.mxu0 %v1662
    %1786 = vmatpush.bf16.msra.mxu0 %v1660
    %1787 = vmatpush.bf16.msra.mxu0 %v1658
    %1788 = vmatpush.bf16.msra.mxu0 %v1656
    %1789 = vmatpush.bf16.msra.mxu0 %v1654
    %1790 = vmatmul.bf16.gmra.mxu0 %v1388
    %v1791 = vpop.f32.mrf.mxu0
    %v1792 = vadd.f32 %v1458, %v1791
    %v1793 = vpop.f32.mrf.mxu0
    %1794 = vdwg.mxu0
    %1795 = vmatpush.bf16.msra.mxu0 %v1684
    %1796 = vmatpush.bf16.msra.mxu0 %v1682
    %1797 = vmatpush.bf16.msra.mxu0 %v1680
    %1798 = vmatpush.bf16.msra.mxu0 %v1678
    %1799 = vmatpush.bf16.msra.mxu0 %v1676
    %1800 = vmatpush.bf16.msra.mxu0 %v1674
    %1801 = vmatpush.bf16.msra.mxu0 %v1672
    %1802 = vmatpush.bf16.msra.mxu0 %v1670
    %1803 = vmatmul.bf16.gmra.mxu0 %v1389
    %v1804 = vpop.f32.mrf.mxu0
    %v1805 = vadd.f32 %v1792, %v1804
    %v1806 = vpop.f32.mrf.mxu0
    %1807 = vdwg.mxu0
    %1808 = vmatpush.bf16.msra.mxu0 %v1700
    %1809 = vmatpush.bf16.msra.mxu0 %v1698
    %1810 = vmatpush.bf16.msra.mxu0 %v1696
    %1811 = vmatpush.bf16.msra.mxu0 %v1694
    %1812 = vmatpush.bf16.msra.mxu0 %v1692
    %1813 = vmatpush.bf16.msra.mxu0 %v1690
    %1814 = vmatpush.bf16.msra.mxu0 %v1688
    %1815 = vmatpush.bf16.msra.mxu0 %v1686
    %1816 = vmatmul.bf16.gmra.mxu0 %v1390
    %v1817 = vpop.f32.mrf.mxu0
    %v1818 = vadd.f32 %v1805, %v1817
    %v1819 = vpop.f32.mrf.mxu0
    %1820 = vdwg.mxu0
    %1821 = vmatpush.bf16.msra.mxu0 %v1716
    %1822 = vmatpush.bf16.msra.mxu0 %v1714
    %1823 = vmatpush.bf16.msra.mxu0 %v1712
    %1824 = vmatpush.bf16.msra.mxu0 %v1710
    %1825 = vmatpush.bf16.msra.mxu0 %v1708
    %1826 = vmatpush.bf16.msra.mxu0 %v1706
    %1827 = vmatpush.bf16.msra.mxu0 %v1704
    %1828 = vmatpush.bf16.msra.mxu0 %v1702
    %1829 = vmatmul.bf16.gmra.mxu0 %v1391
    %v1830 = vpop.f32.mrf.mxu0
    %v1831 = vadd.f32 %v1818, %v1830
    %v1832 = vpop.f32.mrf.mxu0
    %1833 = vdwg.mxu0
    %1834 = vmatpush.bf16.msra.mxu0 %v1669
    %1835 = vmatpush.bf16.msra.mxu0 %v1667
    %1836 = vmatpush.bf16.msra.mxu0 %v1665
    %1837 = vmatpush.bf16.msra.mxu0 %v1663
    %1838 = vmatpush.bf16.msra.mxu0 %v1661
    %1839 = vmatpush.bf16.msra.mxu0 %v1659
    %1840 = vmatpush.bf16.msra.mxu0 %v1657
    %1841 = vmatpush.bf16.msra.mxu0 %v1655
    %1842 = vmatmul.bf16.gmra.mxu0 %v1388
    %v1843 = vpop.f32.mrf.mxu0
    %v1844 = vadd.f32 %v1459, %v1843
    %v1845 = vpop.f32.mrf.mxu0
    %1846 = vdwg.mxu0
    %1847 = vmatpush.bf16.msra.mxu0 %v1685
    %1848 = vmatpush.bf16.msra.mxu0 %v1683
    %1849 = vmatpush.bf16.msra.mxu0 %v1681
    %1850 = vmatpush.bf16.msra.mxu0 %v1679
    %1851 = vmatpush.bf16.msra.mxu0 %v1677
    %1852 = vmatpush.bf16.msra.mxu0 %v1675
    %1853 = vmatpush.bf16.msra.mxu0 %v1673
    %1854 = vmatpush.bf16.msra.mxu0 %v1671
    %1855 = vmatmul.bf16.gmra.mxu0 %v1389
    %v1856 = vpop.f32.mrf.mxu0
    %v1857 = vadd.f32 %v1844, %v1856
    %v1858 = vpop.f32.mrf.mxu0
    %1859 = vdwg.mxu0
    %1860 = vmatpush.bf16.msra.mxu0 %v1701
    %1861 = vmatpush.bf16.msra.mxu0 %v1699
    %1862 = vmatpush.bf16.msra.mxu0 %v1697
    %1863 = vmatpush.bf16.msra.mxu0 %v1695
    %1864 = vmatpush.bf16.msra.mxu0 %v1693
    %1865 = vmatpush.bf16.msra.mxu0 %v1691
    %1866 = vmatpush.bf16.msra.mxu0 %v1689
    %1867 = vmatpush.bf16.msra.mxu0 %v1687
    %1868 = vmatmul.bf16.gmra.mxu0 %v1390
    %v1869 = vpop.f32.mrf.mxu0
    %v1870 = vadd.f32 %v1857, %v1869
    %v1871 = vpop.f32.mrf.mxu0
    %1872 = vdwg.mxu0
    %1873 = vmatpush.bf16.msra.mxu0 %v1717
    %1874 = vmatpush.bf16.msra.mxu0 %v1715
    %1875 = vmatpush.bf16.msra.mxu0 %v1713
    %1876 = vmatpush.bf16.msra.mxu0 %v1711
    %1877 = vmatpush.bf16.msra.mxu0 %v1709
    %1878 = vmatpush.bf16.msra.mxu0 %v1707
    %1879 = vmatpush.bf16.msra.mxu0 %v1705
    %1880 = vmatpush.bf16.msra.mxu0 %v1703
    %1881 = vmatmul.bf16.gmra.mxu0 %v1391
    %v1882 = vpop.f32.mrf.mxu0
    %v1883 = vadd.f32 %v1870, %v1882
    %v1884 = vpop.f32.mrf.mxu0
    %1885 = vdwg.mxu0
    %v1886 = vmax.f32 %v1831, 0.0
    %v1887 = vmax.f32 %v1883, 0.0
    %v1888 = vpack.c.bf16 %v1886, %v1886
    %v1889 = vpack.c.bf16 %v1887, %v1887
    %v1890 = vld [vmem:[%s7] sm:$0x3]
    %v1891 = vld [vmem:[#allocation2] sm:$0x1]
    %1893 = vset.pattern.permute.xlu0 0
    %1894 = vperm.xlu0 %1893, %v1891
    %v1895 = vpop.permute.xlu0 %1894
    %v1897 = vperm.slane %v1895, 0
    %1899 = vst [vmem:[#allocation1] ss:$9 sm:$0xff] %v1890
    %v1900 = vld [vmem:[#allocation1] sm:$0xff]
    %v1901 = vld [vmem:[#allocation1 + $0x9] sm:$0xff]
    %1904 = vmatpush.bf16.xpose.msra.mxu0 0
    %1905 = vmatpush.bf16.xpose.msra.mxu0 0
    %1906 = vmatpush.bf16.xpose.msra.mxu0 0
    %1907 = vmatpush.bf16.xpose.msra.mxu0 0
    %1908 = vmatpush.bf16.xpose.msra.mxu0 0
    %1909 = vmatpush.bf16.xpose.msra.mxu0 0
    %1910 = vmatpush.bf16.xpose.msra.mxu0 0
    %1911 = vmatpush.bf16.xpose.msra.mxu0 %v1888
    %1912 = vmatmul.bf16.gmra.mxu0 %v1900
    %v1913 = vpop.f32.mrf.mxu0
    %v1914 = vadd.f32 %v1897, %v1913
    %v1915 = vpop.f32.mrf.mxu0
    %1916 = vdwg.mxu0
    %1917 = vmatpush.bf16.xpose.msra.mxu0 0
    %1918 = vmatpush.bf16.xpose.msra.mxu0 0
    %1919 = vmatpush.bf16.xpose.msra.mxu0 0
    %1920 = vmatpush.bf16.xpose.msra.mxu0 0
    %1921 = vmatpush.bf16.xpose.msra.mxu0 0
    %1922 = vmatpush.bf16.xpose.msra.mxu0 0
    %1923 = vmatpush.bf16.xpose.msra.mxu0 0
    %1924 = vmatpush.bf16.xpose.msra.mxu0 %v1889
    %1925 = vmatmul.bf16.gmra.mxu0 %v1901
    %v1926 = vpop.f32.mrf.mxu0
    %v1927 = vadd.f32 %v1914, %v1926
    %v1928 = vpop.f32.mrf.mxu0
    %1929 = vdwg.mxu0
    %vm1930 = vcmask 57344
    %1931 = vst.msk [vmem:[#allocation12] sm:$0x1] %vm1930, %v1927
    // Predicated region
    $region58: #{tpu_custom_call.1} parent=1 // pred_check
      _
    $region59: #{tpu_custom_call.1} parent=1 // pred_check_branch
      %1933 = sbr.rel (0) target = $region61
    $region60: #{tpu_custom_call.1} parent=1 // pred_region
      %1935 = vsyncadd [#allocation5], 0
      %s1937 = sshll.u32 [#allocation12], 4
      %s1938 = int_to_ptr.vmem [resolvable:$true] %s1937
      %s1939 = sshll.u32 %s9, 4
      %s1940 = int_to_ptr.hbm [resolvable:$true] %s1939
      %1942 = dma.vmem_to_hbm [thread:$0]  %s1938, 16, %s1940, [#allocation5]
    $region61: #{tpu_custom_call.1} parent=1 // pred_fallthru
      _
    // Predicated region
    $region62: #{tpu_custom_call.1} parent=1 // pred_check
      _
    $region63: #{tpu_custom_call.1} parent=1 // pred_check_branch
      %1944 = sbr.rel (0) target = $region65
    $region64: #{tpu_custom_call.1} parent=1 // pred_region
      %1946 = dma.done [#allocation5], 16
    $region65: #{tpu_custom_call.1} parent=1 // pred_fallthru
      _
    %1947 = vsyncpa [#allocation4], 1
    %1948 = vsyncpa [#allocation7], 1
    %1949 = vsyncpa [#allocation10], 1
    %1950 = vsyncpa [#allocation5], 1

</llo_original>
